<compile_context>
chip_gen: v7x
topology: tpu7x:2x2x1
jax: 0.10.0
libtpu: 0.0.40
codegen_flags: <defaults>
</compile_context>

<pallas_src>
import jax
import jax.numpy as jnp
from jax import lax
from jax.experimental import pallas as pl
from jax.experimental.pallas import tpu as pltpu


def make_traj_kernel(num_layers, hidden_dim, N, F, steps):
    H = hidden_dim

    def kernel(*refs):
        x_ref = refs[0]           # (N, F)        initial state for this sample
        out_ref = refs[-2]        # (steps, N, F) trajectory for this sample
        state_ref = refs[-1]      # (N, F) f32    VMEM scratch: running state
        param_refs = refs[1:-2]   # all weights / biases (grid-invariant)

        # ---- seed: trajectory[:, 0] = initial_state -------------------------
        x0 = x_ref[...].astype(jnp.float32)
        state_ref[...] = x0
        out_ref[0] = x0.astype(out_ref.dtype)

        # ---- step-invariant values hoisted out of the time loop -------------
        ii = lax.broadcasted_iota(jnp.int32, (N, N), 0)
        jj = lax.broadcasted_iota(jnp.int32, (N, N), 1)
        diag = ii == jj

        @pl.loop(1, steps)
        def _step(t):
            params = iter(param_refs)

            def take():
                return next(params)[...]

            x = state_ref[...]                                   # (N, F) f32
            x_b = x.astype(jnp.bfloat16)

            # ---------------- compute_adjacency (transpose-free Gram) -------
            pos = x[:, :3]                                       # (N, 3)
            gram = lax.dot_general(pos, pos, (((1,), (1,)), ((), ())),
                                   preferred_element_type=jnp.float32)  # (N,N)
            diag_g = jnp.where(diag, gram, 0.0)
            sq_i = jnp.sum(diag_g, axis=1, keepdims=True)        # (N, 1) |p_i|^2
            sq_j = jnp.sum(diag_g, axis=0, keepdims=True)        # (1, N) |p_j|^2
            d2 = jnp.maximum(sq_i + sq_j - 2.0 * gram, 0.0)      # clamp fp noise
            dist = jnp.sqrt(d2 + 1e-8)
            adj = jnp.exp(dist * (-1.0 / 5.0))
            adj = jnp.where(diag, 0.0, adj)                      # zero diagonal
            # Row-normalize once (hoisted out of layer loop), EUP reciprocal.
            adj_sum = jnp.sum(adj, axis=-1, keepdims=True) + 1e-8
            norm_adj = (adj * pl.reciprocal(adj_sum, approx=True)
                        ).astype(jnp.bfloat16)

            # ---------------- GCNetwork: stacked GCNLayers -------------------
            h = x
            for li in range(num_layers):
                Wcat = take()                  # (d_in, 2H) bf16: [:H]=self, [H:]=linear
                b_self, b_lin, gma, bta = take(), take(), take(), take()
                comb = jnp.dot(h.astype(jnp.bfloat16), Wcat,
                               preferred_element_type=jnp.float32)   # (N, 2H)
                self_f = comb[:, :H] + b_self
                lin = comb[:, H:] + b_lin
                neigh = jnp.dot(norm_adj, lin.astype(jnp.bfloat16),
                                preferred_element_type=jnp.float32)
                o = self_f + neigh
                # LayerNorm (eps=1e-5, biased var): concurrent reductions on o.
                mu = jnp.mean(o, axis=-1, keepdims=True)
                ms = jnp.mean(o * o, axis=-1, keepdims=True)
                var = jnp.maximum(ms - mu * mu, 0.0)
                o = gma * ((o - mu) * lax.rsqrt(var + 1e-5)) + bta
                if li < num_layers - 1:                           # ReLU, all but last
                    o = jnp.maximum(o, 0.0)
                h = o                                             # (N, H)

            h_b = h.astype(jnp.bfloat16)

            # ---------------- GCNetwork.output_layer on cat([states, h]) ----
            oW1s, oW1x, ob1, oW2, ob2 = take(), take(), take(), take(), take()
            hid = (jnp.dot(x_b, oW1s, preferred_element_type=jnp.float32)
                   + jnp.dot(h_b, oW1x, preferred_element_type=jnp.float32) + ob1)
            hid = jnp.maximum(hid, 0.0)
            inter = jnp.dot(hid.astype(jnp.bfloat16), oW2,
                            preferred_element_type=jnp.float32) + ob2

            # ---------------- GCN.node_update on cat([current, interaction]) -
            nW1c, nW1i, nb1, nW2, nb2, nW3, nb3 = (take(), take(), take(),
                                                   take(), take(), take(), take())
            u = (jnp.dot(x_b, nW1c, preferred_element_type=jnp.float32)
                 + jnp.dot(inter.astype(jnp.bfloat16), nW1i,
                           preferred_element_type=jnp.float32) + nb1)
            u = jnp.maximum(u, 0.0)
            u = jnp.maximum(jnp.dot(u.astype(jnp.bfloat16), nW2,
                                    preferred_element_type=jnp.float32) + nb2, 0.0)
            u = jnp.dot(u.astype(jnp.bfloat16), nW3,
                        preferred_element_type=jnp.float32) + nb3       # (N, F)

            new_state = x + u * 0.1
            state_ref[...] = new_state
            out_ref[t] = new_state.astype(out_ref.dtype)

    return kernel


def gcn_forward(initial_state, time_points, params_flat, *, num_layers, hidden_dim):
    """Equivalent of GCN.forward: returns trajectory (B, steps, N, F)."""
    B, N, F = initial_state.shape
    steps = int(len(time_points))   # reference uses only len(time_points)
    kernel = make_traj_kernel(num_layers, hidden_dim, N, F, steps)

    in_specs = [pl.BlockSpec((None, N, F), lambda b: (b, 0, 0))]
    # Weights: full-array blocks with grid-invariant index_map (DMA'd once).
    in_specs += [pl.BlockSpec(p.shape, lambda b: (0, 0)) for p in params_flat]

    return pl.pallas_call(
        kernel,
        out_shape=jax.ShapeDtypeStruct((B, steps, N, F), initial_state.dtype),
        grid_spec=pltpu.PrefetchScalarGridSpec(
            num_scalar_prefetch=0,
            grid=(B,),
            in_specs=in_specs,
            out_specs=pl.BlockSpec((None, steps, N, F), lambda b: (b, 0, 0, 0)),
            scratch_shapes=[pltpu.VMEM((N, F), jnp.float32)],
        ),
        compiler_params=pltpu.CompilerParams(
            dimension_semantics=("parallel",)),
    )(initial_state, *params_flat)


def init_params(key, feature_dim, hidden_dim, num_layers):
    """Deterministic, kernel-ready parameters (PyTorch-Linear-like uniform).

    Matmul weights are pre-transposed to (in, out), merged (linear +
    self_transform -> one (d_in, 2H) slab per GCN layer), cat-weights split for
    the two-operand matmul trick, and cast to bf16.  Biases / LayerNorm affine
    stay f32.
    """
    F, H = feature_dim, hidden_dim
    keys = iter(jax.random.split(key, 64))

    def dense(fan_in, fan_out):
        k1, k2 = jax.random.split(next(keys))
        lim = float(1.0 / (fan_in ** 0.5))
        W = jax.random.uniform(k1, (fan_in, fan_out), jnp.float32, -lim, lim)
        b = jax.random.uniform(k2, (1, fan_out), jnp.float32, -lim, lim)
        return W, b

    def bf(w):
        return w.astype(jnp.bfloat16)

    params = []
    # GCN layers: layer 0 is (F -> H), remaining are (H -> H)
    for li in range(num_layers):
        d_in = F if li == 0 else H
        Wl, bl = dense(d_in, H)        # self.linear
        Ws, bs = dense(d_in, H)        # self.self_transform
        Wcat = jnp.concatenate([Ws, Wl], axis=1)   # [:, :H]=self, [:, H:]=linear
        params += [bf(Wcat), bs, bl,
                   jnp.ones((1, H), jnp.float32),   # LayerNorm weight
                   jnp.zeros((1, H), jnp.float32)]  # LayerNorm bias
    # GCNetwork.output_layer: Linear(F+H, H), ReLU, Linear(H, F)
    W1, b1 = dense(F + H, H)
    params += [bf(W1[:F, :]), bf(W1[F:, :]), b1]    # split for cat([states, x])
    W2, b2 = dense(H, F)
    params += [bf(W2), b2]
    # GCN.node_update: Linear(2F, H), ReLU, Linear(H, H), ReLU, Linear(H, F)
    W1, b1 = dense(2 * F, H)
    params += [bf(W1[:F, :]), bf(W1[F:, :]), b1]    # split for cat([cur, inter])
    W2, b2 = dense(H, H)
    params += [bf(W2), b2]
    W3, b3 = dense(H, F)
    params += [bf(W3), b3]
    return params


if __name__ == "__main__":
    B, N, F, H, L = 2, 8, 6, 32, 3      # batch, bodies, feature_dim, hidden_dim, layers
    steps = 4

    key = jax.random.PRNGKey(0)
    kp, kx = jax.random.split(key)
    params = init_params(kp, F, H, L)
    initial_state = jax.random.normal(kx, (B, N, F), jnp.float32)
    time_points = jnp.linspace(0.0, 1.0, steps)

    traj = gcn_forward(initial_state, time_points, params, num_layers=L, hidden_dim=H)
    traj = jax.block_until_ready(traj)
    assert traj.shape == (B, steps, N, F)
    assert bool(jnp.all(jnp.isfinite(traj)))
    # trajectory[:, 0] must equal the initial state
    assert bool(jnp.allclose(traj[:, 0], initial_state))
    print("KERNEL_OK")
</pallas_src>

<mosaic_0001>
module attributes {stable_mosaic.version = 11 : i64} {
  func.func @kernel(%arg0: i32, %arg1: memref<1x8x6xf32, #tpu.memory_space<vmem>>, %arg2: memref<6x64xbf16, #tpu.memory_space<vmem>>, %arg3: memref<1x32xf32, #tpu.memory_space<vmem>>, %arg4: memref<1x32xf32, #tpu.memory_space<vmem>>, %arg5: memref<1x32xf32, #tpu.memory_space<vmem>>, %arg6: memref<1x32xf32, #tpu.memory_space<vmem>>, %arg7: memref<32x64xbf16, #tpu.memory_space<vmem>>, %arg8: memref<1x32xf32, #tpu.memory_space<vmem>>, %arg9: memref<1x32xf32, #tpu.memory_space<vmem>>, %arg10: memref<1x32xf32, #tpu.memory_space<vmem>>, %arg11: memref<1x32xf32, #tpu.memory_space<vmem>>, %arg12: memref<32x64xbf16, #tpu.memory_space<vmem>>, %arg13: memref<1x32xf32, #tpu.memory_space<vmem>>, %arg14: memref<1x32xf32, #tpu.memory_space<vmem>>, %arg15: memref<1x32xf32, #tpu.memory_space<vmem>>, %arg16: memref<1x32xf32, #tpu.memory_space<vmem>>, %arg17: memref<6x32xbf16, #tpu.memory_space<vmem>>, %arg18: memref<32x32xbf16, #tpu.memory_space<vmem>>, %arg19: memref<1x32xf32, #tpu.memory_space<vmem>>, %arg20: memref<32x6xbf16, #tpu.memory_space<vmem>>, %arg21: memref<1x6xf32, #tpu.memory_space<vmem>>, %arg22: memref<6x32xbf16, #tpu.memory_space<vmem>>, %arg23: memref<6x32xbf16, #tpu.memory_space<vmem>>, %arg24: memref<1x32xf32, #tpu.memory_space<vmem>>, %arg25: memref<32x32xbf16, #tpu.memory_space<vmem>>, %arg26: memref<1x32xf32, #tpu.memory_space<vmem>>, %arg27: memref<32x6xbf16, #tpu.memory_space<vmem>>, %arg28: memref<1x6xf32, #tpu.memory_space<vmem>>, %arg29: memref<1x4x8x6xf32, #tpu.memory_space<vmem>>, %arg30: memref<8x6xf32, #tpu.memory_space<vmem>>) attributes {dimension_semantics = [#tpu.dimension_semantics<parallel>], iteration_bounds = array<i64: 2>, scalar_prefetch = 0 : i64, scratch_operands = 1 : i64, tpu.core_type = #tpu.core_type<tc>, window_params = [{transform_indices = @transform_0, window_bounds = array<i64: 1, 8, 6>}, {pipeline_mode = #tpu.pipeline_mode<synchronous>, transform_indices = @transform_1, window_bounds = array<i64: 6, 64>}, {pipeline_mode = #tpu.pipeline_mode<synchronous>, transform_indices = @transform_2, window_bounds = array<i64: 1, 32>}, {pipeline_mode = #tpu.pipeline_mode<synchronous>, transform_indices = @transform_3, window_bounds = array<i64: 1, 32>}, {pipeline_mode = #tpu.pipeline_mode<synchronous>, transform_indices = @transform_4, window_bounds = array<i64: 1, 32>}, {pipeline_mode = #tpu.pipeline_mode<synchronous>, transform_indices = @transform_5, window_bounds = array<i64: 1, 32>}, {pipeline_mode = #tpu.pipeline_mode<synchronous>, transform_indices = @transform_6, window_bounds = array<i64: 32, 64>}, {pipeline_mode = #tpu.pipeline_mode<synchronous>, transform_indices = @transform_7, window_bounds = array<i64: 1, 32>}, {pipeline_mode = #tpu.pipeline_mode<synchronous>, transform_indices = @transform_8, window_bounds = array<i64: 1, 32>}, {pipeline_mode = #tpu.pipeline_mode<synchronous>, transform_indices = @transform_9, window_bounds = array<i64: 1, 32>}, {pipeline_mode = #tpu.pipeline_mode<synchronous>, transform_indices = @transform_10, window_bounds = array<i64: 1, 32>}, {pipeline_mode = #tpu.pipeline_mode<synchronous>, transform_indices = @transform_11, window_bounds = array<i64: 32, 64>}, {pipeline_mode = #tpu.pipeline_mode<synchronous>, transform_indices = @transform_12, window_bounds = array<i64: 1, 32>}, {pipeline_mode = #tpu.pipeline_mode<synchronous>, transform_indices = @transform_13, window_bounds = array<i64: 1, 32>}, {pipeline_mode = #tpu.pipeline_mode<synchronous>, transform_indices = @transform_14, window_bounds = array<i64: 1, 32>}, {pipeline_mode = #tpu.pipeline_mode<synchronous>, transform_indices = @transform_15, window_bounds = array<i64: 1, 32>}, {pipeline_mode = #tpu.pipeline_mode<synchronous>, transform_indices = @transform_16, window_bounds = array<i64: 6, 32>}, {pipeline_mode = #tpu.pipeline_mode<synchronous>, transform_indices = @transform_17, window_bounds = array<i64: 32, 32>}, {pipeline_mode = #tpu.pipeline_mode<synchronous>, transform_indices = @transform_18, window_bounds = array<i64: 1, 32>}, {pipeline_mode = #tpu.pipeline_mode<synchronous>, transform_indices = @transform_19, window_bounds = array<i64: 32, 6>}, {pipeline_mode = #tpu.pipeline_mode<synchronous>, transform_indices = @transform_20, window_bounds = array<i64: 1, 6>}, {pipeline_mode = #tpu.pipeline_mode<synchronous>, transform_indices = @transform_21, window_bounds = array<i64: 6, 32>}, {pipeline_mode = #tpu.pipeline_mode<synchronous>, transform_indices = @transform_22, window_bounds = array<i64: 6, 32>}, {pipeline_mode = #tpu.pipeline_mode<synchronous>, transform_indices = @transform_23, window_bounds = array<i64: 1, 32>}, {pipeline_mode = #tpu.pipeline_mode<synchronous>, transform_indices = @transform_24, window_bounds = array<i64: 32, 32>}, {pipeline_mode = #tpu.pipeline_mode<synchronous>, transform_indices = @transform_25, window_bounds = array<i64: 1, 32>}, {pipeline_mode = #tpu.pipeline_mode<synchronous>, transform_indices = @transform_26, window_bounds = array<i64: 32, 6>}, {pipeline_mode = #tpu.pipeline_mode<synchronous>, transform_indices = @transform_27, window_bounds = array<i64: 1, 6>}, {transform_indices = @transform_28, window_bounds = array<i64: 1, 4, 8, 6>}]} {
    %c0 = arith.constant 0 : index
    %c0_0 = arith.constant 0 : index
    %c0_1 = arith.constant 0 : index
    %0 = vector.load %arg1[%c0, %c0_0, %c0_1] : memref<1x8x6xf32, #tpu.memory_space<vmem>>, vector<1x8x6xf32>
    %1 = vector.shape_cast %0 : vector<1x8x6xf32> to vector<8x6xf32>
    %c0_2 = arith.constant 0 : index
    %c0_3 = arith.constant 0 : index
    %2 = vector.load %arg30[%c0_2, %c0_3] : memref<8x6xf32, #tpu.memory_space<vmem>>, vector<8x6xf32>
    tpu.vector_store %arg30[%c0_2, %c0_3], %1 {strides = array<i32>} : memref<8x6xf32, #tpu.memory_space<vmem>>, vector<8x6xf32>,
    %c0_4 = arith.constant 0 : index
    %c0_5 = arith.constant 0 : index
    %c0_6 = arith.constant 0 : index
    %c0_7 = arith.constant 0 : index
    %3 = vector.load %arg29[%c0_4, %c0_5, %c0_6, %c0_7] : memref<1x4x8x6xf32, #tpu.memory_space<vmem>>, vector<1x1x8x6xf32>
    %4 = vector.shape_cast %3 : vector<1x1x8x6xf32> to vector<8x6xf32>
    %5 = vector.shape_cast %1 : vector<8x6xf32> to vector<1x1x8x6xf32>
    tpu.vector_store %arg29[%c0_4, %c0_5, %c0_6, %c0_7], %5 {strides = array<i32>} : memref<1x4x8x6xf32, #tpu.memory_space<vmem>>, vector<1x1x8x6xf32>,
    %6 = tpu.iota {dimensions = array<i32: 0>} : vector<8x8xi32>
    %7 = tpu.iota {dimensions = array<i32: 1>} : vector<8x8xi32>
    %8 = arith.cmpi eq, %6, %7 : vector<8x8xi32>
    %c0_i32 = arith.constant 0 : i32
    %c3_i32 = arith.constant 3 : i32
    %9 = arith.addi %c0_i32, %c3_i32 : i32
    %c1_i32 = arith.constant 1 : i32
    scf.for %arg31 = %c0_i32 to %9 step %c1_i32  : i32 {
      %c1_i32_9 = arith.constant 1 : i32
      %10 = arith.muli %arg31, %c1_i32_9 : i32
      %c1_i32_10 = arith.constant 1 : i32
      %11 = arith.addi %c1_i32_10, %10 : i32
      %c0_11 = arith.constant 0 : index
      %c0_12 = arith.constant 0 : index
      %12 = vector.load %arg30[%c0_11, %c0_12] : memref<8x6xf32, #tpu.memory_space<vmem>>, vector<8x6xf32>
      %13 = arith.truncf %12 : vector<8x6xf32> to vector<8x6xbf16>
      %14 = vector.extract_strided_slice %12 {offsets = [0, 0], sizes = [8, 3], strides = [1, 1]} : vector<8x6xf32> to vector<8x3xf32>
      %cst = arith.constant dense<0.000000e+00> : vector<8x8xf32>
      %15 = tpu.matmul %14, %14, %cst {dimension_numbers = #tpu.dot_dimension_numbers<[1], [1], [0], [0], [0, 0, 1, 0], [], []>} : vector<8x3xf32>, vector<8x3xf32>, vector<8x8xf32> -> vector<8x8xf32>
      %cst_13 = arith.constant 0.000000e+00 : f32
      %16 = vector.broadcast %cst_13 : f32 to vector<8x8xf32>
      %17 = arith.select %8, %15, %16 : vector<8x8xi1>, vector<8x8xf32>
      %cst_14 = arith.constant dense<0.000000e+00> : vector<8xf32>
      %18 = vector.multi_reduction <add>, %17, %cst_14 [1] : vector<8x8xf32> to vector<8xf32>
      %19 = vector.shape_cast %18 : vector<8xf32> to vector<8x1xf32>
      %cst_15 = arith.constant dense<0.000000e+00> : vector<8xf32>
      %20 = vector.multi_reduction <add>, %17, %cst_15 [0] : vector<8x8xf32> to vector<8xf32>
      %21 = vector.shape_cast %20 : vector<8xf32> to vector<1x8xf32>
      %22 = vector.broadcast %19 : vector<8x1xf32> to vector<8x8xf32>
      %23 = vector.broadcast %21 : vector<1x8xf32> to vector<8x8xf32>
      %24 = arith.addf %22, %23 : vector<8x8xf32>
      %cst_16 = arith.constant 2.000000e+00 : f32
      %25 = vector.broadcast %cst_16 : f32 to vector<8x8xf32>
      %26 = arith.mulf %25, %15 : vector<8x8xf32>
      %27 = arith.subf %24, %26 : vector<8x8xf32>
      %cst_17 = arith.constant 0.000000e+00 : f32
      %28 = vector.broadcast %cst_17 : f32 to vector<8x8xf32>
      %29 = arith.maximumf %27, %28 : vector<8x8xf32>
      %cst_18 = arith.constant 9.99999993E-9 : f32
      %30 = vector.broadcast %cst_18 : f32 to vector<8x8xf32>
      %31 = arith.addf %29, %30 : vector<8x8xf32>
      %32 = math.sqrt %31 : vector<8x8xf32>
      %cst_19 = arith.constant -2.000000e-01 : f32
      %33 = vector.broadcast %cst_19 : f32 to vector<8x8xf32>
      %34 = arith.mulf %32, %33 : vector<8x8xf32>
      %35 = math.exp %34 : vector<8x8xf32>
      %cst_20 = arith.constant 0.000000e+00 : f32
      %36 = vector.broadcast %cst_20 : f32 to vector<8x8xf32>
      %37 = arith.select %8, %36, %35 : vector<8x8xi1>, vector<8x8xf32>
      %cst_21 = arith.constant dense<0.000000e+00> : vector<8xf32>
      %38 = vector.multi_reduction <add>, %37, %cst_21 [1] : vector<8x8xf32> to vector<8xf32>
      %39 = vector.shape_cast %38 : vector<8xf32> to vector<8x1xf32>
      %cst_22 = arith.constant 9.99999993E-9 : f32
      %40 = vector.broadcast %cst_22 : f32 to vector<8x1xf32>
      %41 = arith.addf %39, %40 : vector<8x1xf32>
      %42 = tpu.reciprocal %41 {approx = true} : vector<8x1xf32> -> vector<8x1xf32>
      %43 = vector.broadcast %42 : vector<8x1xf32> to vector<8x8xf32>
      %44 = arith.mulf %37, %43 : vector<8x8xf32>
      %45 = arith.truncf %44 : vector<8x8xf32> to vector<8x8xbf16>
      %c0_23 = arith.constant 0 : index
      %c0_24 = arith.constant 0 : index
      %46 = vector.load %arg2[%c0_23, %c0_24] : memref<6x64xbf16, #tpu.memory_space<vmem>>, vector<6x64xbf16>
      %c0_25 = arith.constant 0 : index
      %c0_26 = arith.constant 0 : index
      %47 = vector.load %arg3[%c0_25, %c0_26] : memref<1x32xf32, #tpu.memory_space<vmem>>, vector<1x32xf32>
      %c0_27 = arith.constant 0 : index
      %c0_28 = arith.constant 0 : index
      %48 = vector.load %arg4[%c0_27, %c0_28] : memref<1x32xf32, #tpu.memory_space<vmem>>, vector<1x32xf32>
      %c0_29 = arith.constant 0 : index
      %c0_30 = arith.constant 0 : index
      %49 = vector.load %arg5[%c0_29, %c0_30] : memref<1x32xf32, #tpu.memory_space<vmem>>, vector<1x32xf32>
      %c0_31 = arith.constant 0 : index
      %c0_32 = arith.constant 0 : index
      %50 = vector.load %arg6[%c0_31, %c0_32] : memref<1x32xf32, #tpu.memory_space<vmem>>, vector<1x32xf32>
      %51 = arith.truncf %12 : vector<8x6xf32> to vector<8x6xbf16>
      %cst_33 = arith.constant dense<0.000000e+00> : vector<8x64xf32>
      %52 = tpu.matmul %51, %46, %cst_33 {dimension_numbers = #tpu.dot_dimension_numbers<[1], [0], [0], [1], [0, 0, 1, 1], [], []>} : vector<8x6xbf16>, vector<6x64xbf16>, vector<8x64xf32> -> vector<8x64xf32>
      %53 = vector.extract_strided_slice %52 {offsets = [0, 0], sizes = [8, 32], strides = [1, 1]} : vector<8x64xf32> to vector<8x32xf32>
      %54 = vector.broadcast %47 : vector<1x32xf32> to vector<8x32xf32>
      %55 = arith.addf %53, %54 : vector<8x32xf32>
      %56 = vector.extract_strided_slice %52 {offsets = [0, 32], sizes = [8, 32], strides = [1, 1]} : vector<8x64xf32> to vector<8x32xf32>
      %57 = vector.broadcast %48 : vector<1x32xf32> to vector<8x32xf32>
      %58 = arith.addf %56, %57 : vector<8x32xf32>
      %59 = arith.truncf %58 : vector<8x32xf32> to vector<8x32xbf16>
      %cst_34 = arith.constant dense<0.000000e+00> : vector<8x32xf32>
      %60 = tpu.matmul %45, %59, %cst_34 {dimension_numbers = #tpu.dot_dimension_numbers<[1], [0], [0], [1], [0, 0, 1, 1], [], []>} : vector<8x8xbf16>, vector<8x32xbf16>, vector<8x32xf32> -> vector<8x32xf32>
      %61 = arith.addf %55, %60 : vector<8x32xf32>
      %cst_35 = arith.constant dense<0.000000e+00> : vector<8xf32>
      %62 = vector.multi_reduction <add>, %61, %cst_35 [1] : vector<8x32xf32> to vector<8xf32>
      %63 = vector.shape_cast %62 : vector<8xf32> to vector<8x1xf32>
      %cst_36 = arith.constant 3.200000e+01 : f32
      %64 = vector.broadcast %cst_36 : f32 to vector<8x1xf32>
      %65 = arith.divf %63, %64 : vector<8x1xf32>
      %66 = arith.mulf %61, %61 : vector<8x32xf32>
      %cst_37 = arith.constant dense<0.000000e+00> : vector<8xf32>
      %67 = vector.multi_reduction <add>, %66, %cst_37 [1] : vector<8x32xf32> to vector<8xf32>
      %68 = vector.shape_cast %67 : vector<8xf32> to vector<8x1xf32>
      %cst_38 = arith.constant 3.200000e+01 : f32
      %69 = vector.broadcast %cst_38 : f32 to vector<8x1xf32>
      %70 = arith.divf %68, %69 : vector<8x1xf32>
      %71 = arith.mulf %65, %65 : vector<8x1xf32>
      %72 = arith.subf %70, %71 : vector<8x1xf32>
      %cst_39 = arith.constant 0.000000e+00 : f32
      %73 = vector.broadcast %cst_39 : f32 to vector<8x1xf32>
      %74 = arith.maximumf %72, %73 : vector<8x1xf32>
      %75 = vector.broadcast %65 : vector<8x1xf32> to vector<8x32xf32>
      %76 = arith.subf %61, %75 : vector<8x32xf32>
      %cst_40 = arith.constant 9.99999974E-6 : f32
      %77 = vector.broadcast %cst_40 : f32 to vector<8x1xf32>
      %78 = arith.addf %74, %77 : vector<8x1xf32>
      %79 = math.rsqrt %78 : vector<8x1xf32>
      %80 = vector.broadcast %79 : vector<8x1xf32> to vector<8x32xf32>
      %81 = arith.mulf %76, %80 : vector<8x32xf32>
      %82 = vector.broadcast %49 : vector<1x32xf32> to vector<8x32xf32>
      %83 = arith.mulf %82, %81 : vector<8x32xf32>
      %84 = vector.broadcast %50 : vector<1x32xf32> to vector<8x32xf32>
      %85 = arith.addf %83, %84 : vector<8x32xf32>
      %cst_41 = arith.constant 0.000000e+00 : f32
      %86 = vector.broadcast %cst_41 : f32 to vector<8x32xf32>
      %87 = arith.maximumf %85, %86 : vector<8x32xf32>
      %c0_42 = arith.constant 0 : index
      %c0_43 = arith.constant 0 : index
      %88 = vector.load %arg7[%c0_42, %c0_43] : memref<32x64xbf16, #tpu.memory_space<vmem>>, vector<32x64xbf16>
      %c0_44 = arith.constant 0 : index
      %c0_45 = arith.constant 0 : index
      %89 = vector.load %arg8[%c0_44, %c0_45] : memref<1x32xf32, #tpu.memory_space<vmem>>, vector<1x32xf32>
      %c0_46 = arith.constant 0 : index
      %c0_47 = arith.constant 0 : index
      %90 = vector.load %arg9[%c0_46, %c0_47] : memref<1x32xf32, #tpu.memory_space<vmem>>, vector<1x32xf32>
      %c0_48 = arith.constant 0 : index
      %c0_49 = arith.constant 0 : index
      %91 = vector.load %arg10[%c0_48, %c0_49] : memref<1x32xf32, #tpu.memory_space<vmem>>, vector<1x32xf32>
      %c0_50 = arith.constant 0 : index
      %c0_51 = arith.constant 0 : index
      %92 = vector.load %arg11[%c0_50, %c0_51] : memref<1x32xf32, #tpu.memory_space<vmem>>, vector<1x32xf32>
      %93 = arith.truncf %87 : vector<8x32xf32> to vector<8x32xbf16>
      %cst_52 = arith.constant dense<0.000000e+00> : vector<8x64xf32>
      %94 = tpu.matmul %93, %88, %cst_52 {dimension_numbers = #tpu.dot_dimension_numbers<[1], [0], [0], [1], [0, 0, 1, 1], [], []>} : vector<8x32xbf16>, vector<32x64xbf16>, vector<8x64xf32> -> vector<8x64xf32>
      %95 = vector.extract_strided_slice %94 {offsets = [0, 0], sizes = [8, 32], strides = [1, 1]} : vector<8x64xf32> to vector<8x32xf32>
      %96 = vector.broadcast %89 : vector<1x32xf32> to vector<8x32xf32>
      %97 = arith.addf %95, %96 : vector<8x32xf32>
      %98 = vector.extract_strided_slice %94 {offsets = [0, 32], sizes = [8, 32], strides = [1, 1]} : vector<8x64xf32> to vector<8x32xf32>
      %99 = vector.broadcast %90 : vector<1x32xf32> to vector<8x32xf32>
      %100 = arith.addf %98, %99 : vector<8x32xf32>
      %101 = arith.truncf %100 : vector<8x32xf32> to vector<8x32xbf16>
      %cst_53 = arith.constant dense<0.000000e+00> : vector<8x32xf32>
      %102 = tpu.matmul %45, %101, %cst_53 {dimension_numbers = #tpu.dot_dimension_numbers<[1], [0], [0], [1], [0, 0, 1, 1], [], []>} : vector<8x8xbf16>, vector<8x32xbf16>, vector<8x32xf32> -> vector<8x32xf32>
      %103 = arith.addf %97, %102 : vector<8x32xf32>
      %cst_54 = arith.constant dense<0.000000e+00> : vector<8xf32>
      %104 = vector.multi_reduction <add>, %103, %cst_54 [1] : vector<8x32xf32> to vector<8xf32>
      %105 = vector.shape_cast %104 : vector<8xf32> to vector<8x1xf32>
      %cst_55 = arith.constant 3.200000e+01 : f32
      %106 = vector.broadcast %cst_55 : f32 to vector<8x1xf32>
      %107 = arith.divf %105, %106 : vector<8x1xf32>
      %108 = arith.mulf %103, %103 : vector<8x32xf32>
      %cst_56 = arith.constant dense<0.000000e+00> : vector<8xf32>
      %109 = vector.multi_reduction <add>, %108, %cst_56 [1] : vector<8x32xf32> to vector<8xf32>
      %110 = vector.shape_cast %109 : vector<8xf32> to vector<8x1xf32>
      %cst_57 = arith.constant 3.200000e+01 : f32
      %111 = vector.broadcast %cst_57 : f32 to vector<8x1xf32>
      %112 = arith.divf %110, %111 : vector<8x1xf32>
      %113 = arith.mulf %107, %107 : vector<8x1xf32>
      %114 = arith.subf %112, %113 : vector<8x1xf32>
      %cst_58 = arith.constant 0.000000e+00 : f32
      %115 = vector.broadcast %cst_58 : f32 to vector<8x1xf32>
      %116 = arith.maximumf %114, %115 : vector<8x1xf32>
      %117 = vector.broadcast %107 : vector<8x1xf32> to vector<8x32xf32>
      %118 = arith.subf %103, %117 : vector<8x32xf32>
      %cst_59 = arith.constant 9.99999974E-6 : f32
      %119 = vector.broadcast %cst_59 : f32 to vector<8x1xf32>
      %120 = arith.addf %116, %119 : vector<8x1xf32>
      %121 = math.rsqrt %120 : vector<8x1xf32>
      %122 = vector.broadcast %121 : vector<8x1xf32> to vector<8x32xf32>
      %123 = arith.mulf %118, %122 : vector<8x32xf32>
      %124 = vector.broadcast %91 : vector<1x32xf32> to vector<8x32xf32>
      %125 = arith.mulf %124, %123 : vector<8x32xf32>
      %126 = vector.broadcast %92 : vector<1x32xf32> to vector<8x32xf32>
      %127 = arith.addf %125, %126 : vector<8x32xf32>
      %cst_60 = arith.constant 0.000000e+00 : f32
      %128 = vector.broadcast %cst_60 : f32 to vector<8x32xf32>
      %129 = arith.maximumf %127, %128 : vector<8x32xf32>
      %c0_61 = arith.constant 0 : index
      %c0_62 = arith.constant 0 : index
      %130 = vector.load %arg12[%c0_61, %c0_62] : memref<32x64xbf16, #tpu.memory_space<vmem>>, vector<32x64xbf16>
      %c0_63 = arith.constant 0 : index
      %c0_64 = arith.constant 0 : index
      %131 = vector.load %arg13[%c0_63, %c0_64] : memref<1x32xf32, #tpu.memory_space<vmem>>, vector<1x32xf32>
      %c0_65 = arith.constant 0 : index
      %c0_66 = arith.constant 0 : index
      %132 = vector.load %arg14[%c0_65, %c0_66] : memref<1x32xf32, #tpu.memory_space<vmem>>, vector<1x32xf32>
      %c0_67 = arith.constant 0 : index
      %c0_68 = arith.constant 0 : index
      %133 = vector.load %arg15[%c0_67, %c0_68] : memref<1x32xf32, #tpu.memory_space<vmem>>, vector<1x32xf32>
      %c0_69 = arith.constant 0 : index
      %c0_70 = arith.constant 0 : index
      %134 = vector.load %arg16[%c0_69, %c0_70] : memref<1x32xf32, #tpu.memory_space<vmem>>, vector<1x32xf32>
      %135 = arith.truncf %129 : vector<8x32xf32> to vector<8x32xbf16>
      %cst_71 = arith.constant dense<0.000000e+00> : vector<8x64xf32>
      %136 = tpu.matmul %135, %130, %cst_71 {dimension_numbers = #tpu.dot_dimension_numbers<[1], [0], [0], [1], [0, 0, 1, 1], [], []>} : vector<8x32xbf16>, vector<32x64xbf16>, vector<8x64xf32> -> vector<8x64xf32>
      %137 = vector.extract_strided_slice %136 {offsets = [0, 0], sizes = [8, 32], strides = [1, 1]} : vector<8x64xf32> to vector<8x32xf32>
      %138 = vector.broadcast %131 : vector<1x32xf32> to vector<8x32xf32>
      %139 = arith.addf %137, %138 : vector<8x32xf32>
      %140 = vector.extract_strided_slice %136 {offsets = [0, 32], sizes = [8, 32], strides = [1, 1]} : vector<8x64xf32> to vector<8x32xf32>
      %141 = vector.broadcast %132 : vector<1x32xf32> to vector<8x32xf32>
      %142 = arith.addf %140, %141 : vector<8x32xf32>
      %143 = arith.truncf %142 : vector<8x32xf32> to vector<8x32xbf16>
      %cst_72 = arith.constant dense<0.000000e+00> : vector<8x32xf32>
      %144 = tpu.matmul %45, %143, %cst_72 {dimension_numbers = #tpu.dot_dimension_numbers<[1], [0], [0], [1], [0, 0, 1, 1], [], []>} : vector<8x8xbf16>, vector<8x32xbf16>, vector<8x32xf32> -> vector<8x32xf32>
      %145 = arith.addf %139, %144 : vector<8x32xf32>
      %cst_73 = arith.constant dense<0.000000e+00> : vector<8xf32>
      %146 = vector.multi_reduction <add>, %145, %cst_73 [1] : vector<8x32xf32> to vector<8xf32>
      %147 = vector.shape_cast %146 : vector<8xf32> to vector<8x1xf32>
      %cst_74 = arith.constant 3.200000e+01 : f32
      %148 = vector.broadcast %cst_74 : f32 to vector<8x1xf32>
      %149 = arith.divf %147, %148 : vector<8x1xf32>
      %150 = arith.mulf %145, %145 : vector<8x32xf32>
      %cst_75 = arith.constant dense<0.000000e+00> : vector<8xf32>
      %151 = vector.multi_reduction <add>, %150, %cst_75 [1] : vector<8x32xf32> to vector<8xf32>
      %152 = vector.shape_cast %151 : vector<8xf32> to vector<8x1xf32>
      %cst_76 = arith.constant 3.200000e+01 : f32
      %153 = vector.broadcast %cst_76 : f32 to vector<8x1xf32>
      %154 = arith.divf %152, %153 : vector<8x1xf32>
      %155 = arith.mulf %149, %149 : vector<8x1xf32>
      %156 = arith.subf %154, %155 : vector<8x1xf32>
      %cst_77 = arith.constant 0.000000e+00 : f32
      %157 = vector.broadcast %cst_77 : f32 to vector<8x1xf32>
      %158 = arith.maximumf %156, %157 : vector<8x1xf32>
      %159 = vector.broadcast %149 : vector<8x1xf32> to vector<8x32xf32>
      %160 = arith.subf %145, %159 : vector<8x32xf32>
      %cst_78 = arith.constant 9.99999974E-6 : f32
      %161 = vector.broadcast %cst_78 : f32 to vector<8x1xf32>
      %162 = arith.addf %158, %161 : vector<8x1xf32>
      %163 = math.rsqrt %162 : vector<8x1xf32>
      %164 = vector.broadcast %163 : vector<8x1xf32> to vector<8x32xf32>
      %165 = arith.mulf %160, %164 : vector<8x32xf32>
      %166 = vector.broadcast %133 : vector<1x32xf32> to vector<8x32xf32>
      %167 = arith.mulf %166, %165 : vector<8x32xf32>
      %168 = vector.broadcast %134 : vector<1x32xf32> to vector<8x32xf32>
      %169 = arith.addf %167, %168 : vector<8x32xf32>
      %170 = arith.truncf %169 : vector<8x32xf32> to vector<8x32xbf16>
      %c0_79 = arith.constant 0 : index
      %c0_80 = arith.constant 0 : index
      %171 = vector.load %arg17[%c0_79, %c0_80] : memref<6x32xbf16, #tpu.memory_space<vmem>>, vector<6x32xbf16>
      %c0_81 = arith.constant 0 : index
      %c0_82 = arith.constant 0 : index
      %172 = vector.load %arg18[%c0_81, %c0_82] : memref<32x32xbf16, #tpu.memory_space<vmem>>, vector<32x32xbf16>
      %c0_83 = arith.constant 0 : index
      %c0_84 = arith.constant 0 : index
      %173 = vector.load %arg19[%c0_83, %c0_84] : memref<1x32xf32, #tpu.memory_space<vmem>>, vector<1x32xf32>
      %c0_85 = arith.constant 0 : index
      %c0_86 = arith.constant 0 : index
      %174 = vector.load %arg20[%c0_85, %c0_86] : memref<32x6xbf16, #tpu.memory_space<vmem>>, vector<32x6xbf16>
      %c0_87 = arith.constant 0 : index
      %c0_88 = arith.constant 0 : index
      %175 = vector.load %arg21[%c0_87, %c0_88] : memref<1x6xf32, #tpu.memory_space<vmem>>, vector<1x6xf32>
      %cst_89 = arith.constant dense<0.000000e+00> : vector<8x32xf32>
      %176 = tpu.matmul %13, %171, %cst_89 {dimension_numbers = #tpu.dot_dimension_numbers<[1], [0], [0], [1], [0, 0, 1, 1], [], []>} : vector<8x6xbf16>, vector<6x32xbf16>, vector<8x32xf32> -> vector<8x32xf32>
      %cst_90 = arith.constant dense<0.000000e+00> : vector<8x32xf32>
      %177 = tpu.matmul %170, %172, %cst_90 {dimension_numbers = #tpu.dot_dimension_numbers<[1], [0], [0], [1], [0, 0, 1, 1], [], []>} : vector<8x32xbf16>, vector<32x32xbf16>, vector<8x32xf32> -> vector<8x32xf32>
      %178 = arith.addf %176, %177 : vector<8x32xf32>
      %179 = vector.broadcast %173 : vector<1x32xf32> to vector<8x32xf32>
      %180 = arith.addf %178, %179 : vector<8x32xf32>
      %cst_91 = arith.constant 0.000000e+00 : f32
      %181 = vector.broadcast %cst_91 : f32 to vector<8x32xf32>
      %182 = arith.maximumf %180, %181 : vector<8x32xf32>
      %183 = arith.truncf %182 : vector<8x32xf32> to vector<8x32xbf16>
      %cst_92 = arith.constant dense<0.000000e+00> : vector<8x6xf32>
      %184 = tpu.matmul %183, %174, %cst_92 {dimension_numbers = #tpu.dot_dimension_numbers<[1], [0], [0], [1], [0, 0, 1, 1], [], []>} : vector<8x32xbf16>, vector<32x6xbf16>, vector<8x6xf32> -> vector<8x6xf32>
      %185 = vector.broadcast %175 : vector<1x6xf32> to vector<8x6xf32>
      %186 = arith.addf %184, %185 : vector<8x6xf32>
      %c0_93 = arith.constant 0 : index
      %c0_94 = arith.constant 0 : index
      %187 = vector.load %arg22[%c0_93, %c0_94] : memref<6x32xbf16, #tpu.memory_space<vmem>>, vector<6x32xbf16>
      %c0_95 = arith.constant 0 : index
      %c0_96 = arith.constant 0 : index
      %188 = vector.load %arg23[%c0_95, %c0_96] : memref<6x32xbf16, #tpu.memory_space<vmem>>, vector<6x32xbf16>
      %c0_97 = arith.constant 0 : index
      %c0_98 = arith.constant 0 : index
      %189 = vector.load %arg24[%c0_97, %c0_98] : memref<1x32xf32, #tpu.memory_space<vmem>>, vector<1x32xf32>
      %c0_99 = arith.constant 0 : index
      %c0_100 = arith.constant 0 : index
      %190 = vector.load %arg25[%c0_99, %c0_100] : memref<32x32xbf16, #tpu.memory_space<vmem>>, vector<32x32xbf16>
      %c0_101 = arith.constant 0 : index
      %c0_102 = arith.constant 0 : index
      %191 = vector.load %arg26[%c0_101, %c0_102] : memref<1x32xf32, #tpu.memory_space<vmem>>, vector<1x32xf32>
      %c0_103 = arith.constant 0 : index
      %c0_104 = arith.constant 0 : index
      %192 = vector.load %arg27[%c0_103, %c0_104] : memref<32x6xbf16, #tpu.memory_space<vmem>>, vector<32x6xbf16>
      %c0_105 = arith.constant 0 : index
      %c0_106 = arith.constant 0 : index
      %193 = vector.load %arg28[%c0_105, %c0_106] : memref<1x6xf32, #tpu.memory_space<vmem>>, vector<1x6xf32>
      %cst_107 = arith.constant dense<0.000000e+00> : vector<8x32xf32>
      %194 = tpu.matmul %13, %187, %cst_107 {dimension_numbers = #tpu.dot_dimension_numbers<[1], [0], [0], [1], [0, 0, 1, 1], [], []>} : vector<8x6xbf16>, vector<6x32xbf16>, vector<8x32xf32> -> vector<8x32xf32>
      %195 = arith.truncf %186 : vector<8x6xf32> to vector<8x6xbf16>
      %cst_108 = arith.constant dense<0.000000e+00> : vector<8x32xf32>
      %196 = tpu.matmul %195, %188, %cst_108 {dimension_numbers = #tpu.dot_dimension_numbers<[1], [0], [0], [1], [0, 0, 1, 1], [], []>} : vector<8x6xbf16>, vector<6x32xbf16>, vector<8x32xf32> -> vector<8x32xf32>
      %197 = arith.addf %194, %196 : vector<8x32xf32>
      %198 = vector.broadcast %189 : vector<1x32xf32> to vector<8x32xf32>
      %199 = arith.addf %197, %198 : vector<8x32xf32>
      %cst_109 = arith.constant 0.000000e+00 : f32
      %200 = vector.broadcast %cst_109 : f32 to vector<8x32xf32>
      %201 = arith.maximumf %199, %200 : vector<8x32xf32>
      %202 = arith.truncf %201 : vector<8x32xf32> to vector<8x32xbf16>
      %cst_110 = arith.constant dense<0.000000e+00> : vector<8x32xf32>
      %203 = tpu.matmul %202, %190, %cst_110 {dimension_numbers = #tpu.dot_dimension_numbers<[1], [0], [0], [1], [0, 0, 1, 1], [], []>} : vector<8x32xbf16>, vector<32x32xbf16>, vector<8x32xf32> -> vector<8x32xf32>
      %204 = vector.broadcast %191 : vector<1x32xf32> to vector<8x32xf32>
      %205 = arith.addf %203, %204 : vector<8x32xf32>
      %cst_111 = arith.constant 0.000000e+00 : f32
      %206 = vector.broadcast %cst_111 : f32 to vector<8x32xf32>
      %207 = arith.maximumf %205, %206 : vector<8x32xf32>
      %208 = arith.truncf %207 : vector<8x32xf32> to vector<8x32xbf16>
      %cst_112 = arith.constant dense<0.000000e+00> : vector<8x6xf32>
      %209 = tpu.matmul %208, %192, %cst_112 {dimension_numbers = #tpu.dot_dimension_numbers<[1], [0], [0], [1], [0, 0, 1, 1], [], []>} : vector<8x32xbf16>, vector<32x6xbf16>, vector<8x6xf32> -> vector<8x6xf32>
      %210 = vector.broadcast %193 : vector<1x6xf32> to vector<8x6xf32>
      %211 = arith.addf %209, %210 : vector<8x6xf32>
      %cst_113 = arith.constant 1.000000e-01 : f32
      %212 = vector.broadcast %cst_113 : f32 to vector<8x6xf32>
      %213 = arith.mulf %211, %212 : vector<8x6xf32>
      %214 = arith.addf %12, %213 : vector<8x6xf32>
      %c0_114 = arith.constant 0 : index
      %c0_115 = arith.constant 0 : index
      %215 = vector.load %arg30[%c0_114, %c0_115] : memref<8x6xf32, #tpu.memory_space<vmem>>, vector<8x6xf32>
      tpu.vector_store %arg30[%c0_114, %c0_115], %214 {strides = array<i32>} : memref<8x6xf32, #tpu.memory_space<vmem>>, vector<8x6xf32>,
      %c0_116 = arith.constant 0 : index
      %216 = arith.index_cast %11 : i32 to index
      %c0_117 = arith.constant 0 : index
      %c0_118 = arith.constant 0 : index
      %217 = vector.load %arg29[%c0_116, %216, %c0_117, %c0_118] : memref<1x4x8x6xf32, #tpu.memory_space<vmem>>, vector<1x1x8x6xf32>
      %218 = vector.shape_cast %217 : vector<1x1x8x6xf32> to vector<8x6xf32>
      %219 = vector.shape_cast %214 : vector<8x6xf32> to vector<1x1x8x6xf32>
      tpu.vector_store %arg29[%c0_116, %216, %c0_117, %c0_118], %219 {strides = array<i32>} : memref<1x4x8x6xf32, #tpu.memory_space<vmem>>, vector<1x1x8x6xf32>,
    }
    %c3_i32_8 = arith.constant 3 : i32
    return
  }
  func.func @transform_0(%arg0: i32) -> (i32, i32, i32) {
    %c0_i32 = arith.constant 0 : i32
    %c0_i32_0 = arith.constant 0 : i32
    %c0_i32_1 = arith.constant 0 : i32
    return %arg0, %c0_i32, %c0_i32_0 : i32, i32, i32
  }
  func.func @transform_1(%arg0: i32) -> (i32, i32) {
    %c0_i32 = arith.constant 0 : i32
    %c0_i32_0 = arith.constant 0 : i32
    %c0_i32_1 = arith.constant 0 : i32
    return %c0_i32, %c0_i32_0 : i32, i32
  }
  func.func @transform_2(%arg0: i32) -> (i32, i32) {
    %c0_i32 = arith.constant 0 : i32
    %c0_i32_0 = arith.constant 0 : i32
    %c0_i32_1 = arith.constant 0 : i32
    return %c0_i32, %c0_i32_0 : i32, i32
  }
  func.func @transform_3(%arg0: i32) -> (i32, i32) {
    %c0_i32 = arith.constant 0 : i32
    %c0_i32_0 = arith.constant 0 : i32
    %c0_i32_1 = arith.constant 0 : i32
    return %c0_i32, %c0_i32_0 : i32, i32
  }
  func.func @transform_4(%arg0: i32) -> (i32, i32) {
    %c0_i32 = arith.constant 0 : i32
    %c0_i32_0 = arith.constant 0 : i32
    %c0_i32_1 = arith.constant 0 : i32
    return %c0_i32, %c0_i32_0 : i32, i32
  }
  func.func @transform_5(%arg0: i32) -> (i32, i32) {
    %c0_i32 = arith.constant 0 : i32
    %c0_i32_0 = arith.constant 0 : i32
    %c0_i32_1 = arith.constant 0 : i32
    return %c0_i32, %c0_i32_0 : i32, i32
  }
  func.func @transform_6(%arg0: i32) -> (i32, i32) {
    %c0_i32 = arith.constant 0 : i32
    %c0_i32_0 = arith.constant 0 : i32
    %c0_i32_1 = arith.constant 0 : i32
    return %c0_i32, %c0_i32_0 : i32, i32
  }
  func.func @transform_7(%arg0: i32) -> (i32, i32) {
    %c0_i32 = arith.constant 0 : i32
    %c0_i32_0 = arith.constant 0 : i32
    %c0_i32_1 = arith.constant 0 : i32
    return %c0_i32, %c0_i32_0 : i32, i32
  }
  func.func @transform_8(%arg0: i32) -> (i32, i32) {
    %c0_i32 = arith.constant 0 : i32
    %c0_i32_0 = arith.constant 0 : i32
    %c0_i32_1 = arith.constant 0 : i32
    return %c0_i32, %c0_i32_0 : i32, i32
  }
  func.func @transform_9(%arg0: i32) -> (i32, i32) {
    %c0_i32 = arith.constant 0 : i32
    %c0_i32_0 = arith.constant 0 : i32
    %c0_i32_1 = arith.constant 0 : i32
    return %c0_i32, %c0_i32_0 : i32, i32
  }
  func.func @transform_10(%arg0: i32) -> (i32, i32) {
    %c0_i32 = arith.constant 0 : i32
    %c0_i32_0 = arith.constant 0 : i32
    %c0_i32_1 = arith.constant 0 : i32
    return %c0_i32, %c0_i32_0 : i32, i32
  }
  func.func @transform_11(%arg0: i32) -> (i32, i32) {
    %c0_i32 = arith.constant 0 : i32
    %c0_i32_0 = arith.constant 0 : i32
    %c0_i32_1 = arith.constant 0 : i32
    return %c0_i32, %c0_i32_0 : i32, i32
  }
  func.func @transform_12(%arg0: i32) -> (i32, i32) {
    %c0_i32 = arith.constant 0 : i32
    %c0_i32_0 = arith.constant 0 : i32
    %c0_i32_1 = arith.constant 0 : i32
    return %c0_i32, %c0_i32_0 : i32, i32
  }
  func.func @transform_13(%arg0: i32) -> (i32, i32) {
    %c0_i32 = arith.constant 0 : i32
    %c0_i32_0 = arith.constant 0 : i32
    %c0_i32_1 = arith.constant 0 : i32
    return %c0_i32, %c0_i32_0 : i32, i32
  }
  func.func @transform_14(%arg0: i32) -> (i32, i32) {
    %c0_i32 = arith.constant 0 : i32
    %c0_i32_0 = arith.constant 0 : i32
    %c0_i32_1 = arith.constant 0 : i32
    return %c0_i32, %c0_i32_0 : i32, i32
  }
  func.func @transform_15(%arg0: i32) -> (i32, i32) {
    %c0_i32 = arith.constant 0 : i32
    %c0_i32_0 = arith.constant 0 : i32
    %c0_i32_1 = arith.constant 0 : i32
    return %c0_i32, %c0_i32_0 : i32, i32
  }
  func.func @transform_16(%arg0: i32) -> (i32, i32) {
    %c0_i32 = arith.constant 0 : i32
    %c0_i32_0 = arith.constant 0 : i32
    %c0_i32_1 = arith.constant 0 : i32
    return %c0_i32, %c0_i32_0 : i32, i32
  }
  func.func @transform_17(%arg0: i32) -> (i32, i32) {
    %c0_i32 = arith.constant 0 : i32
    %c0_i32_0 = arith.constant 0 : i32
    %c0_i32_1 = arith.constant 0 : i32
    return %c0_i32, %c0_i32_0 : i32, i32
  }
  func.func @transform_18(%arg0: i32) -> (i32, i32) {
    %c0_i32 = arith.constant 0 : i32
    %c0_i32_0 = arith.constant 0 : i32
    %c0_i32_1 = arith.constant 0 : i32
    return %c0_i32, %c0_i32_0 : i32, i32
  }
  func.func @transform_19(%arg0: i32) -> (i32, i32) {
    %c0_i32 = arith.constant 0 : i32
    %c0_i32_0 = arith.constant 0 : i32
    %c0_i32_1 = arith.constant 0 : i32
    return %c0_i32, %c0_i32_0 : i32, i32
  }
  func.func @transform_20(%arg0: i32) -> (i32, i32) {
    %c0_i32 = arith.constant 0 : i32
    %c0_i32_0 = arith.constant 0 : i32
    %c0_i32_1 = arith.constant 0 : i32
    return %c0_i32, %c0_i32_0 : i32, i32
  }
  func.func @transform_21(%arg0: i32) -> (i32, i32) {
    %c0_i32 = arith.constant 0 : i32
    %c0_i32_0 = arith.constant 0 : i32
    %c0_i32_1 = arith.constant 0 : i32
    return %c0_i32, %c0_i32_0 : i32, i32
  }
  func.func @transform_22(%arg0: i32) -> (i32, i32) {
    %c0_i32 = arith.constant 0 : i32
    %c0_i32_0 = arith.constant 0 : i32
    %c0_i32_1 = arith.constant 0 : i32
    return %c0_i32, %c0_i32_0 : i32, i32
  }
  func.func @transform_23(%arg0: i32) -> (i32, i32) {
    %c0_i32 = arith.constant 0 : i32
    %c0_i32_0 = arith.constant 0 : i32
    %c0_i32_1 = arith.constant 0 : i32
    return %c0_i32, %c0_i32_0 : i32, i32
  }
  func.func @transform_24(%arg0: i32) -> (i32, i32) {
    %c0_i32 = arith.constant 0 : i32
    %c0_i32_0 = arith.constant 0 : i32
    %c0_i32_1 = arith.constant 0 : i32
    return %c0_i32, %c0_i32_0 : i32, i32
  }
  func.func @transform_25(%arg0: i32) -> (i32, i32) {
    %c0_i32 = arith.constant 0 : i32
    %c0_i32_0 = arith.constant 0 : i32
    %c0_i32_1 = arith.constant 0 : i32
    return %c0_i32, %c0_i32_0 : i32, i32
  }
  func.func @transform_26(%arg0: i32) -> (i32, i32) {
    %c0_i32 = arith.constant 0 : i32
    %c0_i32_0 = arith.constant 0 : i32
    %c0_i32_1 = arith.constant 0 : i32
    return %c0_i32, %c0_i32_0 : i32, i32
  }
  func.func @transform_27(%arg0: i32) -> (i32, i32) {
    %c0_i32 = arith.constant 0 : i32
    %c0_i32_0 = arith.constant 0 : i32
    %c0_i32_1 = arith.constant 0 : i32
    return %c0_i32, %c0_i32_0 : i32, i32
  }
  func.func @transform_28(%arg0: i32) -> (i32, i32, i32, i32) {
    %c0_i32 = arith.constant 0 : i32
    %c0_i32_0 = arith.constant 0 : i32
    %c0_i32_1 = arith.constant 0 : i32
    %c0_i32_2 = arith.constant 0 : i32
    return %arg0, %c0_i32, %c0_i32_0, %c0_i32_1 : i32, i32, i32, i32
  }
}

</mosaic_0001>

<llo_original>
// kernel: tpu_custom_call.1
$region0: #{tpu_custom_call.1}
  #allocation0 [shape = 'u32[]', space=smem, size = 0x4, offset = 0x4, fixed_abs, tag = 'smem constant byte address 0x4 - core index']
  #allocation1 [shape = 'u32[144,128]{1,0:T(1,128)}', space=vmem, size = 0x12000, scoped, tag = 'internal scratch']
  #allocation2 [shape = 'f32[8,6]{1,0:T(8,128)}', space=vmem, size = 0x1000, scoped, tag = 'scratch operand']
  %s0 = inlined_call_operand.vmem [shape: f32[2,8,6], index: 0, kind: input, shape index: {}]
  %s1 = inlined_call_operand.hbm [shape: bf16[6,64], index: 1, kind: input, shape index: {}]
  %s2 = inlined_call_operand.vmem [shape: f32[1,32], index: 2, kind: input, shape index: {}]
  %s3 = inlined_call_operand.vmem [shape: f32[1,32], index: 3, kind: input, shape index: {}]
  %s4 = inlined_call_operand.hbm [shape: f32[1,32], index: 4, kind: input, shape index: {}]
  %s5 = inlined_call_operand.hbm [shape: f32[1,32], index: 5, kind: input, shape index: {}]
  %s6 = inlined_call_operand.vmem [shape: bf16[32,64], index: 6, kind: input, shape index: {}]
  %s7 = inlined_call_operand.vmem [shape: f32[1,32], index: 7, kind: input, shape index: {}]
  %s8 = inlined_call_operand.vmem [shape: f32[1,32], index: 8, kind: input, shape index: {}]
  %s9 = inlined_call_operand.vmem [shape: f32[1,32], index: 9, kind: input, shape index: {}]
  %s10 = inlined_call_operand.vmem [shape: f32[1,32], index: 10, kind: input, shape index: {}]
  %s11 = inlined_call_operand.vmem [shape: bf16[32,64], index: 11, kind: input, shape index: {}]
  %s12 = inlined_call_operand.vmem [shape: f32[1,32], index: 12, kind: input, shape index: {}]
  %s13 = inlined_call_operand.vmem [shape: f32[1,32], index: 13, kind: input, shape index: {}]
  %s14 = inlined_call_operand.vmem [shape: f32[1,32], index: 14, kind: input, shape index: {}]
  %s15 = inlined_call_operand.vmem [shape: f32[1,32], index: 15, kind: input, shape index: {}]
  %s16 = inlined_call_operand.vmem [shape: bf16[6,32], index: 16, kind: input, shape index: {}]
  %s17 = inlined_call_operand.vmem [shape: bf16[32,32], index: 17, kind: input, shape index: {}]
  %s18 = inlined_call_operand.vmem [shape: f32[1,32], index: 18, kind: input, shape index: {}]
  %s19 = inlined_call_operand.vmem [shape: bf16[32,6], index: 19, kind: input, shape index: {}]
  %s20 = inlined_call_operand.vmem [shape: f32[1,6], index: 20, kind: input, shape index: {}]
  %s21 = inlined_call_operand.vmem [shape: bf16[6,32], index: 21, kind: input, shape index: {}]
  %s22 = inlined_call_operand.vmem [shape: bf16[6,32], index: 22, kind: input, shape index: {}]
  %s23 = inlined_call_operand.vmem [shape: f32[1,32], index: 23, kind: input, shape index: {}]
  %s24 = inlined_call_operand.vmem [shape: bf16[32,32], index: 24, kind: input, shape index: {}]
  %s25 = inlined_call_operand.vmem [shape: f32[1,32], index: 25, kind: input, shape index: {}]
  %s26 = inlined_call_operand.vmem [shape: bf16[32,6], index: 26, kind: input, shape index: {}]
  %s27 = inlined_call_operand.vmem [shape: f32[1,6], index: 27, kind: input, shape index: {}]
  %s28 = inlined_call_operand.vmem [shape: f32[2,4,8,6], index: 28, kind: output, shape index: {}]
  %s29 = sld [smem:[#allocation0]]
  $region164: #{tpu_custom_call.1} parent=0
    _
  %s31 = ssub.s32 1, %s29
  %s32 = scalar_select 0, %s31, %s29
  $region1: #{tpu_custom_call.1} parent=0
    #allocation3 [shape = 'u8[2048]{0}', space=vmem, size = 0x800, scoped, tag = 'input window, operand 1, single buffered']
    #allocation4 [shape = 's32[2]{0}', space=sflag, size = 0x8, scoped, tag = 'scoped memory for tpu_custom_call.1']
    #allocation5 [shape = 'u8[512]{0}', space=vmem, size = 0x400, scoped, tag = 'input window, operand 4, single buffered']
    #allocation6 [shape = 's32[1]{0}', space=sflag, size = 0x4, scoped, tag = 'scoped memory for tpu_custom_call.1']
    #allocation7 [shape = 'u8[512]{0}', space=vmem, size = 0x400, scoped, tag = 'input window, operand 5, single buffered']
    %33 = vsyncpa [#allocation4], 0
    %34 = vsyncpa [#allocation6], 0
    loop: start=0, step=1, limit=4
    $region2: #{tpu_custom_call.1} parent=1 // loop_pre_header
      _
    $region3: #{tpu_custom_call.1} parent=1 // loop_header
      %s36 = sphi 0, %s40
      %p37 = scmp.ge.s32.totalorder %s36, 4
      %s46 = sphi 0, %s48
      %s49 = sphi 0, %s46
      %s50 = sphi 0, %s49
      %s66 = sphi 0, %s50
      %s70 = sphi 0, %s70
      %s72 = sphi 0, %s70
      %s73 = sphi 0, %s72
      %s87 = sphi 0, %s73
      %s91 = sphi 0, %s91
      %s93 = sphi 0, %s91
      %s94 = sphi 0, %s93
      %s108 = sphi 0, %s94
      %s112 = sphi 0, %s112
      %s114 = sphi 0, %s112
      %s115 = sphi 0, %s114
      %s129 = sphi 0, %s115
      %s133 = sphi 0, %s133
      %s135 = sphi 0, %s133
      %s136 = sphi 0, %s135
      %s150 = sphi 0, %s136
      %s154 = sphi 0, %s154
      %s156 = sphi 0, %s154
      %s157 = sphi 0, %s156
      %s171 = sphi 0, %s157
      %s175 = sphi 0, %s175
      %s177 = sphi 0, %s175
      %s178 = sphi 0, %s177
      %s192 = sphi 0, %s178
      %s196 = sphi 0, %s196
      %s198 = sphi 0, %s196
      %s199 = sphi 0, %s198
      %s213 = sphi 0, %s199
      %s217 = sphi 0, %s217
      %s219 = sphi 0, %s217
      %s220 = sphi 0, %s219
      %s234 = sphi 0, %s220
      %s238 = sphi 0, %s238
      %s240 = sphi 0, %s238
      %s241 = sphi 0, %s240
      %s255 = sphi 0, %s241
      %s259 = sphi 0, %s259
      %s261 = sphi 0, %s259
      %s262 = sphi 0, %s261
      %s276 = sphi 0, %s262
      %s280 = sphi 0, %s280
      %s282 = sphi 0, %s280
      %s283 = sphi 0, %s282
      %s297 = sphi 0, %s283
      %s301 = sphi 0, %s301
      %s303 = sphi 0, %s301
      %s304 = sphi 0, %s303
      %s318 = sphi 0, %s304
      %s322 = sphi 0, %s322
      %s324 = sphi 0, %s322
      %s325 = sphi 0, %s324
      %s339 = sphi 0, %s325
      %s343 = sphi 0, %s343
      %s345 = sphi 0, %s343
      %s346 = sphi 0, %s345
      %s360 = sphi 0, %s346
      %s364 = sphi 0, %s364
      %s366 = sphi 0, %s364
      %s367 = sphi 0, %s366
      %s381 = sphi 0, %s367
      %s385 = sphi 0, %s385
      %s387 = sphi 0, %s385
      %s388 = sphi 0, %s387
      %s402 = sphi 0, %s388
      %s406 = sphi 0, %s406
      %s408 = sphi 0, %s406
      %s409 = sphi 0, %s408
      %s423 = sphi 0, %s409
      %s427 = sphi 0, %s427
      %s429 = sphi 0, %s427
      %s430 = sphi 0, %s429
      %s444 = sphi 0, %s430
      %s448 = sphi 0, %s448
      %s450 = sphi 0, %s448
      %s451 = sphi 0, %s450
      %s465 = sphi 0, %s451
      %s469 = sphi 0, %s469
      %s471 = sphi 0, %s469
      %s472 = sphi 0, %s471
      %s486 = sphi 0, %s472
      %s490 = sphi 0, %s490
      %s492 = sphi 0, %s490
      %s493 = sphi 0, %s492
      %s507 = sphi 0, %s493
      %s511 = sphi 0, %s511
      %s513 = sphi 0, %s511
      %s514 = sphi 0, %s513
      %s528 = sphi 0, %s514
      %s532 = sphi 0, %s532
      %s534 = sphi 0, %s532
      %s535 = sphi 0, %s534
      %s549 = sphi 0, %s535
      %s553 = sphi 0, %s553
      %s555 = sphi 0, %s553
      %s556 = sphi 0, %s555
      %s570 = sphi 0, %s556
      %s574 = sphi 0, %s574
      %s576 = sphi 0, %s574
      %s577 = sphi 0, %s576
      %s591 = sphi 0, %s577
      %s595 = sphi 0, %s595
      %s597 = sphi 0, %s595
      %s598 = sphi 0, %s597
      %s612 = sphi 0, %s598
      %s616 = sphi 0, %s616
      %s618 = sphi 0, %s616
      %s619 = sphi 0, %s618
      %s633 = sphi 0, %s619
      %s639 = sphi 0, %s641
      %s642 = sphi 0, %s639
      %s643 = sphi 0, %s642
      %s659 = sphi 0, %s643
    $region4: #{tpu_custom_call.1} parent=1 // loop_header_branch
      %39 = sbr.rel (%p37) target = $region8
    $region5: #{tpu_custom_call.1} parent=1 // loop_body
      %s41 = ssub.s32 %s36, 1
      %s42 = ssub.s32 %s36, 2
      %s43 = sadd.s32 %s36, 1
      %s44 = ssub.s32 %s36, %s43
      %p45 = scmp.eq.s32.totalorder %s44, 0
      %s47 = sadd.s32 %s46, 1
      %s48 = scalar_select %p45, %s46, %s47
      %p51 = pneg %p45
      %p52 = scmp.eq.s32.totalorder %s36, 1
      %p53 = por %p51, %p52
      %p54 = scmp.ne.s32.totalorder %s46, %s49
      %p55 = scmp.eq.s32.totalorder %s36, 0
      %p56 = por %p54, %p55
      %p57 = scmp.ne.s32.totalorder %s46, %s49
      %p58 = scmp.eq.s32.totalorder %s41, 1
      %p59 = por %p57, %p58
      %p60 = scmp.ne.s32.totalorder %s49, %s50
      %p61 = scmp.eq.s32.totalorder %s41, 0
      %p62 = por %p60, %p61
      %p63 = scmp.ne.s32.totalorder %s49, %s50
      %p64 = scmp.eq.s32.totalorder %s42, 1
      %p65 = por %p63, %p64
      %p67 = scmp.ne.s32.totalorder %s50, %s66
      %p68 = scmp.eq.s32.totalorder %s42, 0
      %p69 = por %p67, %p68
      %s71 = sadd.s32 %s70, 1
      %p74 = scmp.eq.s32.totalorder %s36, 1
      %p75 = scmp.ne.s32.totalorder %s70, %s72
      %p76 = scmp.eq.s32.totalorder %s36, 0
      %p77 = por %p75, %p76
      %p78 = scmp.ne.s32.totalorder %s70, %s72
      %p79 = scmp.eq.s32.totalorder %s41, 1
      %p80 = por %p78, %p79
      %p81 = scmp.ne.s32.totalorder %s72, %s73
      %p82 = scmp.eq.s32.totalorder %s41, 0
      %p83 = por %p81, %p82
      %p84 = scmp.ne.s32.totalorder %s72, %s73
      %p85 = scmp.eq.s32.totalorder %s42, 1
      %p86 = por %p84, %p85
      %p88 = scmp.ne.s32.totalorder %s73, %s87
      %p89 = scmp.eq.s32.totalorder %s42, 0
      %p90 = por %p88, %p89
      %s92 = sadd.s32 %s91, 1
      %p95 = scmp.eq.s32.totalorder %s36, 1
      %p96 = scmp.ne.s32.totalorder %s91, %s93
      %p97 = scmp.eq.s32.totalorder %s36, 0
      %p98 = por %p96, %p97
      %p99 = scmp.ne.s32.totalorder %s91, %s93
      %p100 = scmp.eq.s32.totalorder %s41, 1
      %p101 = por %p99, %p100
      %p102 = scmp.ne.s32.totalorder %s93, %s94
      %p103 = scmp.eq.s32.totalorder %s41, 0
      %p104 = por %p102, %p103
      %p105 = scmp.ne.s32.totalorder %s93, %s94
      %p106 = scmp.eq.s32.totalorder %s42, 1
      %p107 = por %p105, %p106
      %p109 = scmp.ne.s32.totalorder %s94, %s108
      %p110 = scmp.eq.s32.totalorder %s42, 0
      %p111 = por %p109, %p110
      %s113 = sadd.s32 %s112, 1
      %p116 = scmp.eq.s32.totalorder %s36, 1
      %p117 = scmp.ne.s32.totalorder %s112, %s114
      %p118 = scmp.eq.s32.totalorder %s36, 0
      %p119 = por %p117, %p118
      %p120 = scmp.ne.s32.totalorder %s112, %s114
      %p121 = scmp.eq.s32.totalorder %s41, 1
      %p122 = por %p120, %p121
      %p123 = scmp.ne.s32.totalorder %s114, %s115
      %p124 = scmp.eq.s32.totalorder %s41, 0
      %p125 = por %p123, %p124
      %p126 = scmp.ne.s32.totalorder %s114, %s115
      %p127 = scmp.eq.s32.totalorder %s42, 1
      %p128 = por %p126, %p127
      %p130 = scmp.ne.s32.totalorder %s115, %s129
      %p131 = scmp.eq.s32.totalorder %s42, 0
      %p132 = por %p130, %p131
      %s134 = sadd.s32 %s133, 1
      %p137 = scmp.eq.s32.totalorder %s36, 1
      %p138 = scmp.ne.s32.totalorder %s133, %s135
      %p139 = scmp.eq.s32.totalorder %s36, 0
      %p140 = por %p138, %p139
      %p141 = scmp.ne.s32.totalorder %s133, %s135
      %p142 = scmp.eq.s32.totalorder %s41, 1
      %p143 = por %p141, %p142
      %p144 = scmp.ne.s32.totalorder %s135, %s136
      %p145 = scmp.eq.s32.totalorder %s41, 0
      %p146 = por %p144, %p145
      %p147 = scmp.ne.s32.totalorder %s135, %s136
      %p148 = scmp.eq.s32.totalorder %s42, 1
      %p149 = por %p147, %p148
      %p151 = scmp.ne.s32.totalorder %s136, %s150
      %p152 = scmp.eq.s32.totalorder %s42, 0
      %p153 = por %p151, %p152
      %s155 = sadd.s32 %s154, 1
      %p158 = scmp.eq.s32.totalorder %s36, 1
      %p159 = scmp.ne.s32.totalorder %s154, %s156
      %p160 = scmp.eq.s32.totalorder %s36, 0
      %p161 = por %p159, %p160
      %p162 = scmp.ne.s32.totalorder %s154, %s156
      %p163 = scmp.eq.s32.totalorder %s41, 1
      %p164 = por %p162, %p163
      %p165 = scmp.ne.s32.totalorder %s156, %s157
      %p166 = scmp.eq.s32.totalorder %s41, 0
      %p167 = por %p165, %p166
      %p168 = scmp.ne.s32.totalorder %s156, %s157
      %p169 = scmp.eq.s32.totalorder %s42, 1
      %p170 = por %p168, %p169
      %p172 = scmp.ne.s32.totalorder %s157, %s171
      %p173 = scmp.eq.s32.totalorder %s42, 0
      %p174 = por %p172, %p173
      %s176 = sadd.s32 %s175, 1
      %p179 = scmp.eq.s32.totalorder %s36, 1
      %p180 = scmp.ne.s32.totalorder %s175, %s177
      %p181 = scmp.eq.s32.totalorder %s36, 0
      %p182 = por %p180, %p181
      %p183 = scmp.ne.s32.totalorder %s175, %s177
      %p184 = scmp.eq.s32.totalorder %s41, 1
      %p185 = por %p183, %p184
      %p186 = scmp.ne.s32.totalorder %s177, %s178
      %p187 = scmp.eq.s32.totalorder %s41, 0
      %p188 = por %p186, %p187
      %p189 = scmp.ne.s32.totalorder %s177, %s178
      %p190 = scmp.eq.s32.totalorder %s42, 1
      %p191 = por %p189, %p190
      %p193 = scmp.ne.s32.totalorder %s178, %s192
      %p194 = scmp.eq.s32.totalorder %s42, 0
      %p195 = por %p193, %p194
      %s197 = sadd.s32 %s196, 1
      %p200 = scmp.eq.s32.totalorder %s36, 1
      %p201 = scmp.ne.s32.totalorder %s196, %s198
      %p202 = scmp.eq.s32.totalorder %s36, 0
      %p203 = por %p201, %p202
      %p204 = scmp.ne.s32.totalorder %s196, %s198
      %p205 = scmp.eq.s32.totalorder %s41, 1
      %p206 = por %p204, %p205
      %p207 = scmp.ne.s32.totalorder %s198, %s199
      %p208 = scmp.eq.s32.totalorder %s41, 0
      %p209 = por %p207, %p208
      %p210 = scmp.ne.s32.totalorder %s198, %s199
      %p211 = scmp.eq.s32.totalorder %s42, 1
      %p212 = por %p210, %p211
      %p214 = scmp.ne.s32.totalorder %s199, %s213
      %p215 = scmp.eq.s32.totalorder %s42, 0
      %p216 = por %p214, %p215
      %s218 = sadd.s32 %s217, 1
      %p221 = scmp.eq.s32.totalorder %s36, 1
      %p222 = scmp.ne.s32.totalorder %s217, %s219
      %p223 = scmp.eq.s32.totalorder %s36, 0
      %p224 = por %p222, %p223
      %p225 = scmp.ne.s32.totalorder %s217, %s219
      %p226 = scmp.eq.s32.totalorder %s41, 1
      %p227 = por %p225, %p226
      %p228 = scmp.ne.s32.totalorder %s219, %s220
      %p229 = scmp.eq.s32.totalorder %s41, 0
      %p230 = por %p228, %p229
      %p231 = scmp.ne.s32.totalorder %s219, %s220
      %p232 = scmp.eq.s32.totalorder %s42, 1
      %p233 = por %p231, %p232
      %p235 = scmp.ne.s32.totalorder %s220, %s234
      %p236 = scmp.eq.s32.totalorder %s42, 0
      %p237 = por %p235, %p236
      %s239 = sadd.s32 %s238, 1
      %p242 = scmp.eq.s32.totalorder %s36, 1
      %p243 = scmp.ne.s32.totalorder %s238, %s240
      %p244 = scmp.eq.s32.totalorder %s36, 0
      %p245 = por %p243, %p244
      %p246 = scmp.ne.s32.totalorder %s238, %s240
      %p247 = scmp.eq.s32.totalorder %s41, 1
      %p248 = por %p246, %p247
      %p249 = scmp.ne.s32.totalorder %s240, %s241
      %p250 = scmp.eq.s32.totalorder %s41, 0
      %p251 = por %p249, %p250
      %p252 = scmp.ne.s32.totalorder %s240, %s241
      %p253 = scmp.eq.s32.totalorder %s42, 1
      %p254 = por %p252, %p253
      %p256 = scmp.ne.s32.totalorder %s241, %s255
      %p257 = scmp.eq.s32.totalorder %s42, 0
      %p258 = por %p256, %p257
      %s260 = sadd.s32 %s259, 1
      %p263 = scmp.eq.s32.totalorder %s36, 1
      %p264 = scmp.ne.s32.totalorder %s259, %s261
      %p265 = scmp.eq.s32.totalorder %s36, 0
      %p266 = por %p264, %p265
      %p267 = scmp.ne.s32.totalorder %s259, %s261
      %p268 = scmp.eq.s32.totalorder %s41, 1
      %p269 = por %p267, %p268
      %p270 = scmp.ne.s32.totalorder %s261, %s262
      %p271 = scmp.eq.s32.totalorder %s41, 0
      %p272 = por %p270, %p271
      %p273 = scmp.ne.s32.totalorder %s261, %s262
      %p274 = scmp.eq.s32.totalorder %s42, 1
      %p275 = por %p273, %p274
      %p277 = scmp.ne.s32.totalorder %s262, %s276
      %p278 = scmp.eq.s32.totalorder %s42, 0
      %p279 = por %p277, %p278
      %s281 = sadd.s32 %s280, 1
      %p284 = scmp.eq.s32.totalorder %s36, 1
      %p285 = scmp.ne.s32.totalorder %s280, %s282
      %p286 = scmp.eq.s32.totalorder %s36, 0
      %p287 = por %p285, %p286
      %p288 = scmp.ne.s32.totalorder %s280, %s282
      %p289 = scmp.eq.s32.totalorder %s41, 1
      %p290 = por %p288, %p289
      %p291 = scmp.ne.s32.totalorder %s282, %s283
      %p292 = scmp.eq.s32.totalorder %s41, 0
      %p293 = por %p291, %p292
      %p294 = scmp.ne.s32.totalorder %s282, %s283
      %p295 = scmp.eq.s32.totalorder %s42, 1
      %p296 = por %p294, %p295
      %p298 = scmp.ne.s32.totalorder %s283, %s297
      %p299 = scmp.eq.s32.totalorder %s42, 0
      %p300 = por %p298, %p299
      %s302 = sadd.s32 %s301, 1
      %p305 = scmp.eq.s32.totalorder %s36, 1
      %p306 = scmp.ne.s32.totalorder %s301, %s303
      %p307 = scmp.eq.s32.totalorder %s36, 0
      %p308 = por %p306, %p307
      %p309 = scmp.ne.s32.totalorder %s301, %s303
      %p310 = scmp.eq.s32.totalorder %s41, 1
      %p311 = por %p309, %p310
      %p312 = scmp.ne.s32.totalorder %s303, %s304
      %p313 = scmp.eq.s32.totalorder %s41, 0
      %p314 = por %p312, %p313
      %p315 = scmp.ne.s32.totalorder %s303, %s304
      %p316 = scmp.eq.s32.totalorder %s42, 1
      %p317 = por %p315, %p316
      %p319 = scmp.ne.s32.totalorder %s304, %s318
      %p320 = scmp.eq.s32.totalorder %s42, 0
      %p321 = por %p319, %p320
      %s323 = sadd.s32 %s322, 1
      %p326 = scmp.eq.s32.totalorder %s36, 1
      %p327 = scmp.ne.s32.totalorder %s322, %s324
      %p328 = scmp.eq.s32.totalorder %s36, 0
      %p329 = por %p327, %p328
      %p330 = scmp.ne.s32.totalorder %s322, %s324
      %p331 = scmp.eq.s32.totalorder %s41, 1
      %p332 = por %p330, %p331
      %p333 = scmp.ne.s32.totalorder %s324, %s325
      %p334 = scmp.eq.s32.totalorder %s41, 0
      %p335 = por %p333, %p334
      %p336 = scmp.ne.s32.totalorder %s324, %s325
      %p337 = scmp.eq.s32.totalorder %s42, 1
      %p338 = por %p336, %p337
      %p340 = scmp.ne.s32.totalorder %s325, %s339
      %p341 = scmp.eq.s32.totalorder %s42, 0
      %p342 = por %p340, %p341
      %s344 = sadd.s32 %s343, 1
      %p347 = scmp.eq.s32.totalorder %s36, 1
      %p348 = scmp.ne.s32.totalorder %s343, %s345
      %p349 = scmp.eq.s32.totalorder %s36, 0
      %p350 = por %p348, %p349
      %p351 = scmp.ne.s32.totalorder %s343, %s345
      %p352 = scmp.eq.s32.totalorder %s41, 1
      %p353 = por %p351, %p352
      %p354 = scmp.ne.s32.totalorder %s345, %s346
      %p355 = scmp.eq.s32.totalorder %s41, 0
      %p356 = por %p354, %p355
      %p357 = scmp.ne.s32.totalorder %s345, %s346
      %p358 = scmp.eq.s32.totalorder %s42, 1
      %p359 = por %p357, %p358
      %p361 = scmp.ne.s32.totalorder %s346, %s360
      %p362 = scmp.eq.s32.totalorder %s42, 0
      %p363 = por %p361, %p362
      %s365 = sadd.s32 %s364, 1
      %p368 = scmp.eq.s32.totalorder %s36, 1
      %p369 = scmp.ne.s32.totalorder %s364, %s366
      %p370 = scmp.eq.s32.totalorder %s36, 0
      %p371 = por %p369, %p370
      %p372 = scmp.ne.s32.totalorder %s364, %s366
      %p373 = scmp.eq.s32.totalorder %s41, 1
      %p374 = por %p372, %p373
      %p375 = scmp.ne.s32.totalorder %s366, %s367
      %p376 = scmp.eq.s32.totalorder %s41, 0
      %p377 = por %p375, %p376
      %p378 = scmp.ne.s32.totalorder %s366, %s367
      %p379 = scmp.eq.s32.totalorder %s42, 1
      %p380 = por %p378, %p379
      %p382 = scmp.ne.s32.totalorder %s367, %s381
      %p383 = scmp.eq.s32.totalorder %s42, 0
      %p384 = por %p382, %p383
      %s386 = sadd.s32 %s385, 1
      %p389 = scmp.eq.s32.totalorder %s36, 1
      %p390 = scmp.ne.s32.totalorder %s385, %s387
      %p391 = scmp.eq.s32.totalorder %s36, 0
      %p392 = por %p390, %p391
      %p393 = scmp.ne.s32.totalorder %s385, %s387
      %p394 = scmp.eq.s32.totalorder %s41, 1
      %p395 = por %p393, %p394
      %p396 = scmp.ne.s32.totalorder %s387, %s388
      %p397 = scmp.eq.s32.totalorder %s41, 0
      %p398 = por %p396, %p397
      %p399 = scmp.ne.s32.totalorder %s387, %s388
      %p400 = scmp.eq.s32.totalorder %s42, 1
      %p401 = por %p399, %p400
      %p403 = scmp.ne.s32.totalorder %s388, %s402
      %p404 = scmp.eq.s32.totalorder %s42, 0
      %p405 = por %p403, %p404
      %s407 = sadd.s32 %s406, 1
      %p410 = scmp.eq.s32.totalorder %s36, 1
      %p411 = scmp.ne.s32.totalorder %s406, %s408
      %p412 = scmp.eq.s32.totalorder %s36, 0
      %p413 = por %p411, %p412
      %p414 = scmp.ne.s32.totalorder %s406, %s408
      %p415 = scmp.eq.s32.totalorder %s41, 1
      %p416 = por %p414, %p415
      %p417 = scmp.ne.s32.totalorder %s408, %s409
      %p418 = scmp.eq.s32.totalorder %s41, 0
      %p419 = por %p417, %p418
      %p420 = scmp.ne.s32.totalorder %s408, %s409
      %p421 = scmp.eq.s32.totalorder %s42, 1
      %p422 = por %p420, %p421
      %p424 = scmp.ne.s32.totalorder %s409, %s423
      %p425 = scmp.eq.s32.totalorder %s42, 0
      %p426 = por %p424, %p425
      %s428 = sadd.s32 %s427, 1
      %p431 = scmp.eq.s32.totalorder %s36, 1
      %p432 = scmp.ne.s32.totalorder %s427, %s429
      %p433 = scmp.eq.s32.totalorder %s36, 0
      %p434 = por %p432, %p433
      %p435 = scmp.ne.s32.totalorder %s427, %s429
      %p436 = scmp.eq.s32.totalorder %s41, 1
      %p437 = por %p435, %p436
      %p438 = scmp.ne.s32.totalorder %s429, %s430
      %p439 = scmp.eq.s32.totalorder %s41, 0
      %p440 = por %p438, %p439
      %p441 = scmp.ne.s32.totalorder %s429, %s430
      %p442 = scmp.eq.s32.totalorder %s42, 1
      %p443 = por %p441, %p442
      %p445 = scmp.ne.s32.totalorder %s430, %s444
      %p446 = scmp.eq.s32.totalorder %s42, 0
      %p447 = por %p445, %p446
      %s449 = sadd.s32 %s448, 1
      %p452 = scmp.eq.s32.totalorder %s36, 1
      %p453 = scmp.ne.s32.totalorder %s448, %s450
      %p454 = scmp.eq.s32.totalorder %s36, 0
      %p455 = por %p453, %p454
      %p456 = scmp.ne.s32.totalorder %s448, %s450
      %p457 = scmp.eq.s32.totalorder %s41, 1
      %p458 = por %p456, %p457
      %p459 = scmp.ne.s32.totalorder %s450, %s451
      %p460 = scmp.eq.s32.totalorder %s41, 0
      %p461 = por %p459, %p460
      %p462 = scmp.ne.s32.totalorder %s450, %s451
      %p463 = scmp.eq.s32.totalorder %s42, 1
      %p464 = por %p462, %p463
      %p466 = scmp.ne.s32.totalorder %s451, %s465
      %p467 = scmp.eq.s32.totalorder %s42, 0
      %p468 = por %p466, %p467
      %s470 = sadd.s32 %s469, 1
      %p473 = scmp.eq.s32.totalorder %s36, 1
      %p474 = scmp.ne.s32.totalorder %s469, %s471
      %p475 = scmp.eq.s32.totalorder %s36, 0
      %p476 = por %p474, %p475
      %p477 = scmp.ne.s32.totalorder %s469, %s471
      %p478 = scmp.eq.s32.totalorder %s41, 1
      %p479 = por %p477, %p478
      %p480 = scmp.ne.s32.totalorder %s471, %s472
      %p481 = scmp.eq.s32.totalorder %s41, 0
      %p482 = por %p480, %p481
      %p483 = scmp.ne.s32.totalorder %s471, %s472
      %p484 = scmp.eq.s32.totalorder %s42, 1
      %p485 = por %p483, %p484
      %p487 = scmp.ne.s32.totalorder %s472, %s486
      %p488 = scmp.eq.s32.totalorder %s42, 0
      %p489 = por %p487, %p488
      %s491 = sadd.s32 %s490, 1
      %p494 = scmp.eq.s32.totalorder %s36, 1
      %p495 = scmp.ne.s32.totalorder %s490, %s492
      %p496 = scmp.eq.s32.totalorder %s36, 0
      %p497 = por %p495, %p496
      %p498 = scmp.ne.s32.totalorder %s490, %s492
      %p499 = scmp.eq.s32.totalorder %s41, 1
      %p500 = por %p498, %p499
      %p501 = scmp.ne.s32.totalorder %s492, %s493
      %p502 = scmp.eq.s32.totalorder %s41, 0
      %p503 = por %p501, %p502
      %p504 = scmp.ne.s32.totalorder %s492, %s493
      %p505 = scmp.eq.s32.totalorder %s42, 1
      %p506 = por %p504, %p505
      %p508 = scmp.ne.s32.totalorder %s493, %s507
      %p509 = scmp.eq.s32.totalorder %s42, 0
      %p510 = por %p508, %p509
      %s512 = sadd.s32 %s511, 1
      %p515 = scmp.eq.s32.totalorder %s36, 1
      %p516 = scmp.ne.s32.totalorder %s511, %s513
      %p517 = scmp.eq.s32.totalorder %s36, 0
      %p518 = por %p516, %p517
      %p519 = scmp.ne.s32.totalorder %s511, %s513
      %p520 = scmp.eq.s32.totalorder %s41, 1
      %p521 = por %p519, %p520
      %p522 = scmp.ne.s32.totalorder %s513, %s514
      %p523 = scmp.eq.s32.totalorder %s41, 0
      %p524 = por %p522, %p523
      %p525 = scmp.ne.s32.totalorder %s513, %s514
      %p526 = scmp.eq.s32.totalorder %s42, 1
      %p527 = por %p525, %p526
      %p529 = scmp.ne.s32.totalorder %s514, %s528
      %p530 = scmp.eq.s32.totalorder %s42, 0
      %p531 = por %p529, %p530
      %s533 = sadd.s32 %s532, 1
      %p536 = scmp.eq.s32.totalorder %s36, 1
      %p537 = scmp.ne.s32.totalorder %s532, %s534
      %p538 = scmp.eq.s32.totalorder %s36, 0
      %p539 = por %p537, %p538
      %p540 = scmp.ne.s32.totalorder %s532, %s534
      %p541 = scmp.eq.s32.totalorder %s41, 1
      %p542 = por %p540, %p541
      %p543 = scmp.ne.s32.totalorder %s534, %s535
      %p544 = scmp.eq.s32.totalorder %s41, 0
      %p545 = por %p543, %p544
      %p546 = scmp.ne.s32.totalorder %s534, %s535
      %p547 = scmp.eq.s32.totalorder %s42, 1
      %p548 = por %p546, %p547
      %p550 = scmp.ne.s32.totalorder %s535, %s549
      %p551 = scmp.eq.s32.totalorder %s42, 0
      %p552 = por %p550, %p551
      %s554 = sadd.s32 %s553, 1
      %p557 = scmp.eq.s32.totalorder %s36, 1
      %p558 = scmp.ne.s32.totalorder %s553, %s555
      %p559 = scmp.eq.s32.totalorder %s36, 0
      %p560 = por %p558, %p559
      %p561 = scmp.ne.s32.totalorder %s553, %s555
      %p562 = scmp.eq.s32.totalorder %s41, 1
      %p563 = por %p561, %p562
      %p564 = scmp.ne.s32.totalorder %s555, %s556
      %p565 = scmp.eq.s32.totalorder %s41, 0
      %p566 = por %p564, %p565
      %p567 = scmp.ne.s32.totalorder %s555, %s556
      %p568 = scmp.eq.s32.totalorder %s42, 1
      %p569 = por %p567, %p568
      %p571 = scmp.ne.s32.totalorder %s556, %s570
      %p572 = scmp.eq.s32.totalorder %s42, 0
      %p573 = por %p571, %p572
      %s575 = sadd.s32 %s574, 1
      %p578 = scmp.eq.s32.totalorder %s36, 1
      %p579 = scmp.ne.s32.totalorder %s574, %s576
      %p580 = scmp.eq.s32.totalorder %s36, 0
      %p581 = por %p579, %p580
      %p582 = scmp.ne.s32.totalorder %s574, %s576
      %p583 = scmp.eq.s32.totalorder %s41, 1
      %p584 = por %p582, %p583
      %p585 = scmp.ne.s32.totalorder %s576, %s577
      %p586 = scmp.eq.s32.totalorder %s41, 0
      %p587 = por %p585, %p586
      %p588 = scmp.ne.s32.totalorder %s576, %s577
      %p589 = scmp.eq.s32.totalorder %s42, 1
      %p590 = por %p588, %p589
      %p592 = scmp.ne.s32.totalorder %s577, %s591
      %p593 = scmp.eq.s32.totalorder %s42, 0
      %p594 = por %p592, %p593
      %s596 = sadd.s32 %s595, 1
      %p599 = scmp.eq.s32.totalorder %s36, 1
      %p600 = scmp.ne.s32.totalorder %s595, %s597
      %p601 = scmp.eq.s32.totalorder %s36, 0
      %p602 = por %p600, %p601
      %p603 = scmp.ne.s32.totalorder %s595, %s597
      %p604 = scmp.eq.s32.totalorder %s41, 1
      %p605 = por %p603, %p604
      %p606 = scmp.ne.s32.totalorder %s597, %s598
      %p607 = scmp.eq.s32.totalorder %s41, 0
      %p608 = por %p606, %p607
      %p609 = scmp.ne.s32.totalorder %s597, %s598
      %p610 = scmp.eq.s32.totalorder %s42, 1
      %p611 = por %p609, %p610
      %p613 = scmp.ne.s32.totalorder %s598, %s612
      %p614 = scmp.eq.s32.totalorder %s42, 0
      %p615 = por %p613, %p614
      %s617 = sadd.s32 %s616, 1
      %p620 = scmp.eq.s32.totalorder %s36, 1
      %p621 = scmp.ne.s32.totalorder %s616, %s618
      %p622 = scmp.eq.s32.totalorder %s36, 0
      %p623 = por %p621, %p622
      %p624 = scmp.ne.s32.totalorder %s616, %s618
      %p625 = scmp.eq.s32.totalorder %s41, 1
      %p626 = por %p624, %p625
      %p627 = scmp.ne.s32.totalorder %s618, %s619
      %p628 = scmp.eq.s32.totalorder %s41, 0
      %p629 = por %p627, %p628
      %p630 = scmp.ne.s32.totalorder %s618, %s619
      %p631 = scmp.eq.s32.totalorder %s42, 1
      %p632 = por %p630, %p631
      %p634 = scmp.ne.s32.totalorder %s619, %s633
      %p635 = scmp.eq.s32.totalorder %s42, 0
      %p636 = por %p634, %p635
      %s637 = ssub.s32 %s36, %s43
      %p638 = scmp.eq.s32.totalorder %s637, 0
      %s640 = sadd.s32 %s639, 1
      %s641 = scalar_select %p638, %s639, %s640
      %p644 = pneg %p638
      %p645 = scmp.eq.s32.totalorder %s36, 1
      %p646 = por %p644, %p645
      %p647 = scmp.ne.s32.totalorder %s639, %s642
      %p648 = scmp.eq.s32.totalorder %s36, 0
      %p649 = por %p647, %p648
      %p650 = scmp.ne.s32.totalorder %s639, %s642
      %p651 = scmp.eq.s32.totalorder %s41, 1
      %p652 = por %p650, %p651
      %p653 = scmp.ne.s32.totalorder %s642, %s643
      %p654 = scmp.eq.s32.totalorder %s41, 0
      %p655 = por %p653, %p654
      %p656 = scmp.ne.s32.totalorder %s642, %s643
      %p657 = scmp.eq.s32.totalorder %s42, 1
      %p658 = por %p656, %p657
      %p660 = scmp.ne.s32.totalorder %s643, %s659
      %p661 = scmp.eq.s32.totalorder %s42, 0
      %p662 = por %p660, %p661
      %p663 = scmp.le.s32.totalorder 1, %s36
      %p664 = scmp.lt.s32.totalorder %s36, 3
      %p665 = pnand %p663, %p664
      %p666 = pneg %p665
      // Predicated region
      $region9: #{tpu_custom_call.1} parent=5 // pred_check
        _
      $region10: #{tpu_custom_call.1} parent=5 // pred_check_branch
        %668 = sbr.rel (%p665) target = $region12
      $region11: #{tpu_custom_call.1} parent=5 // pred_region
        %s669 = ssub.s32 %s36, 1
        // Predicated region
        $region13: #{tpu_custom_call.1} parent=11 // pred_check
          %p670 = pneg %p83
        $region14: #{tpu_custom_call.1} parent=11 // pred_check_branch
          %672 = sbr.rel (%p670) target = $region16
        $region15: #{tpu_custom_call.1} parent=11 // pred_region
          %s674 = ssub.s32 64, 64
          %675 = vsyncadd [#allocation4], %s674
          %s677 = sshll.u32 [#allocation3], 4
          %s678 = int_to_ptr.vmem [resolvable:$true] %s677
          %680 = dma.hbm_to_vmem [thread:$0]  %s1, 64, %s678, [#allocation4]
        $region16: #{tpu_custom_call.1} parent=11 // pred_fallthru
          _
        // Predicated region
        $region17: #{tpu_custom_call.1} parent=11 // pred_check
          %p681 = pneg %p104
        $region18: #{tpu_custom_call.1} parent=11 // pred_check_branch
          %683 = sbr.rel (%p681) target = $region20
        $region19: #{tpu_custom_call.1} parent=11 // pred_region
          _
        $region20: #{tpu_custom_call.1} parent=11 // pred_fallthru
          _
        // Predicated region
        $region21: #{tpu_custom_call.1} parent=11 // pred_check
          %p684 = pneg %p125
        $region22: #{tpu_custom_call.1} parent=11 // pred_check_branch
          %686 = sbr.rel (%p684) target = $region24
        $region23: #{tpu_custom_call.1} parent=11 // pred_region
          _
        $region24: #{tpu_custom_call.1} parent=11 // pred_fallthru
          _
        // Predicated region
        $region25: #{tpu_custom_call.1} parent=11 // pred_check
          %p687 = pneg %p146
        $region26: #{tpu_custom_call.1} parent=11 // pred_check_branch
          %689 = sbr.rel (%p687) target = $region28
        $region27: #{tpu_custom_call.1} parent=11 // pred_region
          %s691 = ssub.s32 16, 16
          %692 = vsyncadd [#allocation6], %s691
          %s694 = sshll.u32 [#allocation5], 4
          %s695 = int_to_ptr.vmem [resolvable:$true] %s694
          %697 = dma.hbm_to_vmem [thread:$0]  %s4, 16, %s695, [#allocation6]
        $region28: #{tpu_custom_call.1} parent=11 // pred_fallthru
          _
        // Predicated region
        $region29: #{tpu_custom_call.1} parent=11 // pred_check
          %p698 = pneg %p167
        $region30: #{tpu_custom_call.1} parent=11 // pred_check_branch
          %700 = sbr.rel (%p698) target = $region32
        $region31: #{tpu_custom_call.1} parent=11 // pred_region
          %s702 = ssub.s32 16, 16
          %703 = vsyncadd [#allocation6], %s702
          %s705 = sshll.u32 [#allocation7], 4
          %s706 = int_to_ptr.vmem [resolvable:$true] %s705
          %708 = dma.hbm_to_vmem [thread:$0]  %s5, 16, %s706, [#allocation6]
        $region32: #{tpu_custom_call.1} parent=11 // pred_fallthru
          _
        // Predicated region
        $region33: #{tpu_custom_call.1} parent=11 // pred_check
          %p709 = pneg %p188
        $region34: #{tpu_custom_call.1} parent=11 // pred_check_branch
          %711 = sbr.rel (%p709) target = $region36
        $region35: #{tpu_custom_call.1} parent=11 // pred_region
          _
        $region36: #{tpu_custom_call.1} parent=11 // pred_fallthru
          _
        // Predicated region
        $region37: #{tpu_custom_call.1} parent=11 // pred_check
          %p712 = pneg %p209
        $region38: #{tpu_custom_call.1} parent=11 // pred_check_branch
          %714 = sbr.rel (%p712) target = $region40
        $region39: #{tpu_custom_call.1} parent=11 // pred_region
          _
        $region40: #{tpu_custom_call.1} parent=11 // pred_fallthru
          _
        // Predicated region
        $region41: #{tpu_custom_call.1} parent=11 // pred_check
          %p715 = pneg %p230
        $region42: #{tpu_custom_call.1} parent=11 // pred_check_branch
          %717 = sbr.rel (%p715) target = $region44
        $region43: #{tpu_custom_call.1} parent=11 // pred_region
          _
        $region44: #{tpu_custom_call.1} parent=11 // pred_fallthru
          _
        // Predicated region
        $region45: #{tpu_custom_call.1} parent=11 // pred_check
          %p718 = pneg %p251
        $region46: #{tpu_custom_call.1} parent=11 // pred_check_branch
          %720 = sbr.rel (%p718) target = $region48
        $region47: #{tpu_custom_call.1} parent=11 // pred_region
          _
        $region48: #{tpu_custom_call.1} parent=11 // pred_fallthru
          _
        // Predicated region
        $region49: #{tpu_custom_call.1} parent=11 // pred_check
          %p721 = pneg %p272
        $region50: #{tpu_custom_call.1} parent=11 // pred_check_branch
          %723 = sbr.rel (%p721) target = $region52
        $region51: #{tpu_custom_call.1} parent=11 // pred_region
          _
        $region52: #{tpu_custom_call.1} parent=11 // pred_fallthru
          _
        // Predicated region
        $region53: #{tpu_custom_call.1} parent=11 // pred_check
          %p724 = pneg %p293
        $region54: #{tpu_custom_call.1} parent=11 // pred_check_branch
          %726 = sbr.rel (%p724) target = $region56
        $region55: #{tpu_custom_call.1} parent=11 // pred_region
          _
        $region56: #{tpu_custom_call.1} parent=11 // pred_fallthru
          _
        // Predicated region
        $region57: #{tpu_custom_call.1} parent=11 // pred_check
          %p727 = pneg %p314
        $region58: #{tpu_custom_call.1} parent=11 // pred_check_branch
          %729 = sbr.rel (%p727) target = $region60
        $region59: #{tpu_custom_call.1} parent=11 // pred_region
          _
        $region60: #{tpu_custom_call.1} parent=11 // pred_fallthru
          _
        // Predicated region
        $region61: #{tpu_custom_call.1} parent=11 // pred_check
          %p730 = pneg %p335
        $region62: #{tpu_custom_call.1} parent=11 // pred_check_branch
          %732 = sbr.rel (%p730) target = $region64
        $region63: #{tpu_custom_call.1} parent=11 // pred_region
          _
        $region64: #{tpu_custom_call.1} parent=11 // pred_fallthru
          _
        // Predicated region
        $region65: #{tpu_custom_call.1} parent=11 // pred_check
          %p733 = pneg %p356
        $region66: #{tpu_custom_call.1} parent=11 // pred_check_branch
          %735 = sbr.rel (%p733) target = $region68
        $region67: #{tpu_custom_call.1} parent=11 // pred_region
          _
        $region68: #{tpu_custom_call.1} parent=11 // pred_fallthru
          _
        // Predicated region
        $region69: #{tpu_custom_call.1} parent=11 // pred_check
          %p736 = pneg %p377
        $region70: #{tpu_custom_call.1} parent=11 // pred_check_branch
          %738 = sbr.rel (%p736) target = $region72
        $region71: #{tpu_custom_call.1} parent=11 // pred_region
          _
        $region72: #{tpu_custom_call.1} parent=11 // pred_fallthru
          _
        // Predicated region
        $region73: #{tpu_custom_call.1} parent=11 // pred_check
          %p739 = pneg %p398
        $region74: #{tpu_custom_call.1} parent=11 // pred_check_branch
          %741 = sbr.rel (%p739) target = $region76
        $region75: #{tpu_custom_call.1} parent=11 // pred_region
          _
        $region76: #{tpu_custom_call.1} parent=11 // pred_fallthru
          _
        // Predicated region
        $region77: #{tpu_custom_call.1} parent=11 // pred_check
          %p742 = pneg %p419
        $region78: #{tpu_custom_call.1} parent=11 // pred_check_branch
          %744 = sbr.rel (%p742) target = $region80
        $region79: #{tpu_custom_call.1} parent=11 // pred_region
          _
        $region80: #{tpu_custom_call.1} parent=11 // pred_fallthru
          _
        // Predicated region
        $region81: #{tpu_custom_call.1} parent=11 // pred_check
          %p745 = pneg %p440
        $region82: #{tpu_custom_call.1} parent=11 // pred_check_branch
          %747 = sbr.rel (%p745) target = $region84
        $region83: #{tpu_custom_call.1} parent=11 // pred_region
          _
        $region84: #{tpu_custom_call.1} parent=11 // pred_fallthru
          _
        // Predicated region
        $region85: #{tpu_custom_call.1} parent=11 // pred_check
          %p748 = pneg %p461
        $region86: #{tpu_custom_call.1} parent=11 // pred_check_branch
          %750 = sbr.rel (%p748) target = $region88
        $region87: #{tpu_custom_call.1} parent=11 // pred_region
          _
        $region88: #{tpu_custom_call.1} parent=11 // pred_fallthru
          _
        // Predicated region
        $region89: #{tpu_custom_call.1} parent=11 // pred_check
          %p751 = pneg %p482
        $region90: #{tpu_custom_call.1} parent=11 // pred_check_branch
          %753 = sbr.rel (%p751) target = $region92
        $region91: #{tpu_custom_call.1} parent=11 // pred_region
          _
        $region92: #{tpu_custom_call.1} parent=11 // pred_fallthru
          _
        // Predicated region
        $region93: #{tpu_custom_call.1} parent=11 // pred_check
          %p754 = pneg %p503
        $region94: #{tpu_custom_call.1} parent=11 // pred_check_branch
          %756 = sbr.rel (%p754) target = $region96
        $region95: #{tpu_custom_call.1} parent=11 // pred_region
          _
        $region96: #{tpu_custom_call.1} parent=11 // pred_fallthru
          _
        // Predicated region
        $region97: #{tpu_custom_call.1} parent=11 // pred_check
          %p757 = pneg %p524
        $region98: #{tpu_custom_call.1} parent=11 // pred_check_branch
          %759 = sbr.rel (%p757) target = $region100
        $region99: #{tpu_custom_call.1} parent=11 // pred_region
          _
        $region100: #{tpu_custom_call.1} parent=11 // pred_fallthru
          _
        // Predicated region
        $region101: #{tpu_custom_call.1} parent=11 // pred_check
          %p760 = pneg %p545
        $region102: #{tpu_custom_call.1} parent=11 // pred_check_branch
          %762 = sbr.rel (%p760) target = $region104
        $region103: #{tpu_custom_call.1} parent=11 // pred_region
          _
        $region104: #{tpu_custom_call.1} parent=11 // pred_fallthru
          _
        // Predicated region
        $region105: #{tpu_custom_call.1} parent=11 // pred_check
          %p763 = pneg %p566
        $region106: #{tpu_custom_call.1} parent=11 // pred_check_branch
          %765 = sbr.rel (%p763) target = $region108
        $region107: #{tpu_custom_call.1} parent=11 // pred_region
          _
        $region108: #{tpu_custom_call.1} parent=11 // pred_fallthru
          _
        // Predicated region
        $region109: #{tpu_custom_call.1} parent=11 // pred_check
          %p766 = pneg %p587
        $region110: #{tpu_custom_call.1} parent=11 // pred_check_branch
          %768 = sbr.rel (%p766) target = $region112
        $region111: #{tpu_custom_call.1} parent=11 // pred_region
          _
        $region112: #{tpu_custom_call.1} parent=11 // pred_fallthru
          _
        // Predicated region
        $region113: #{tpu_custom_call.1} parent=11 // pred_check
          %p769 = pneg %p608
        $region114: #{tpu_custom_call.1} parent=11 // pred_check_branch
          %771 = sbr.rel (%p769) target = $region116
        $region115: #{tpu_custom_call.1} parent=11 // pred_region
          _
        $region116: #{tpu_custom_call.1} parent=11 // pred_fallthru
          _
        // Predicated region
        $region117: #{tpu_custom_call.1} parent=11 // pred_check
          %p772 = pneg %p629
        $region118: #{tpu_custom_call.1} parent=11 // pred_check_branch
          %774 = sbr.rel (%p772) target = $region120
        $region119: #{tpu_custom_call.1} parent=11 // pred_region
          _
        $region120: #{tpu_custom_call.1} parent=11 // pred_fallthru
          _
      $region12: #{tpu_custom_call.1} parent=5 // pred_fallthru
        _
      %p775 = scmp.lt.s32.totalorder %s36, 2
      // Predicated region
      $region121: #{tpu_custom_call.1} parent=5 // pred_check
        %p776 = pneg %p775
      $region122: #{tpu_custom_call.1} parent=5 // pred_check_branch
        %778 = sbr.rel (%p776) target = $region124
      $region123: #{tpu_custom_call.1} parent=5 // pred_region
        // Predicated region
        $region125: #{tpu_custom_call.1} parent=123 // pred_check
          %p779 = pneg %p56
        $region126: #{tpu_custom_call.1} parent=123 // pred_check_branch
          %781 = sbr.rel (%p779) target = $region128
        $region127: #{tpu_custom_call.1} parent=123 // pred_region
          %p782 = scmp.lt.s32.totalorder %s36, 1
          %s783 = scalar_select %p782, %s36, 1
          %s784 = smul.addr %s783, 8
          %s785 = scalar_lea.vmem %s0, %s784
        $region128: #{tpu_custom_call.1} parent=123 // pred_fallthru
          _
      $region124: #{tpu_custom_call.1} parent=5 // pred_fallthru
        _
      %p786 = scmp.le.s32.totalorder 1, %s36
      %p787 = scmp.lt.s32.totalorder %s36, 3
      %p788 = pnand %p786, %p787
      %p789 = pneg %p788
      // Predicated region
      $region129: #{tpu_custom_call.1} parent=5 // pred_check
        _
      $region130: #{tpu_custom_call.1} parent=5 // pred_check_branch
        %791 = sbr.rel (%p788) target = $region132
      $region131: #{tpu_custom_call.1} parent=5 // pred_region
        %s792 = ssub.s32 %s36, 1
        // Predicated region
        $region133: #{tpu_custom_call.1} parent=131 // pred_check
          %p793 = pneg %p83
        $region134: #{tpu_custom_call.1} parent=131 // pred_check_branch
          %795 = sbr.rel (%p793) target = $region136
        $region135: #{tpu_custom_call.1} parent=131 // pred_region
          %796 = dma.done [#allocation4], 64
        $region136: #{tpu_custom_call.1} parent=131 // pred_fallthru
          _
        // Predicated region
        $region137: #{tpu_custom_call.1} parent=131 // pred_check
          %p797 = pneg %p146
        $region138: #{tpu_custom_call.1} parent=131 // pred_check_branch
          %799 = sbr.rel (%p797) target = $region140
        $region139: #{tpu_custom_call.1} parent=131 // pred_region
          %800 = dma.done [#allocation6], 16
        $region140: #{tpu_custom_call.1} parent=131 // pred_fallthru
          _
        // Predicated region
        $region141: #{tpu_custom_call.1} parent=131 // pred_check
          %p801 = pneg %p167
        $region142: #{tpu_custom_call.1} parent=131 // pred_check_branch
          %803 = sbr.rel (%p801) target = $region144
        $region143: #{tpu_custom_call.1} parent=131 // pred_region
          %804 = dma.done [#allocation6], 16
        $region144: #{tpu_custom_call.1} parent=131 // pred_fallthru
          _
        %p805 = scmp.lt.s32.totalorder %s41, 1
        %s806 = scalar_select %p805, %s41, 1
        %s807 = smul.addr %s806, 8
        %s808 = scalar_lea.vmem %s0, %s807
        %p809 = pneg %p62
        %p810 = pneg %p59
        %p811 = pneg %p83
        %p812 = pneg %p80
        %p813 = pneg %p104
        %p814 = pneg %p101
        %p815 = pneg %p125
        %p816 = pneg %p122
        %p817 = pneg %p146
        %p818 = pneg %p143
        %p819 = pneg %p167
        %p820 = pneg %p164
        %p821 = pneg %p188
        %p822 = pneg %p185
        %p823 = pneg %p209
        %p824 = pneg %p206
        %p825 = pneg %p230
        %p826 = pneg %p227
        %p827 = pneg %p251
        %p828 = pneg %p248
        %p829 = pneg %p272
        %p830 = pneg %p269
        %p831 = pneg %p293
        %p832 = pneg %p290
        %p833 = pneg %p314
        %p834 = pneg %p311
        %p835 = pneg %p335
        %p836 = pneg %p332
        %p837 = pneg %p356
        %p838 = pneg %p353
        %p839 = pneg %p377
        %p840 = pneg %p374
        %p841 = pneg %p398
        %p842 = pneg %p395
        %p843 = pneg %p419
        %p844 = pneg %p416
        %p845 = pneg %p440
        %p846 = pneg %p437
        %p847 = pneg %p461
        %p848 = pneg %p458
        %p849 = pneg %p482
        %p850 = pneg %p479
        %p851 = pneg %p503
        %p852 = pneg %p500
        %p853 = pneg %p524
        %p854 = pneg %p521
        %p855 = pneg %p545
        %p856 = pneg %p542
        %p857 = pneg %p566
        %p858 = pneg %p563
        %p859 = pneg %p587
        %p860 = pneg %p584
        %p861 = pneg %p608
        %p862 = pneg %p605
        %p863 = pneg %p629
        %p864 = pneg %p626
        %p865 = pneg %p655
        %p866 = pneg %p652
        %p867 = scmp.lt.s32.totalorder %s41, 1
        %s868 = scalar_select %p867, %s41, 1
        %s869 = smul.addr %s868, 4
        %s870 = smul.addr %s869, 8
        %s871 = scalar_lea.vmem %s28, %s870
        %p872 = scmp.lt.s32.totalorder %s41, 1
        %s873 = scalar_select %p872, %s41, 1
        %s874 = smul.addr %s873, 8
        %s875 = scalar_lea.vmem %s0, %s874
        %p876 = scmp.lt.s32.totalorder %s41, 1
        %s877 = scalar_select %p876, %s41, 1
        %s878 = smul.addr %s877, 4
        %s879 = smul.addr %s878, 8
        %s880 = scalar_lea.vmem %s28, %s879
        %v882 = vld [vmem:[%s875] sm:$0xff]
        %vm883 = vcmask 48128
        %884 = vst.msk [vmem:[#allocation2] sm:$0xff] %vm883, %v882
        %885 = vst.msk [vmem:[%s880] sm:$0xff] %vm883, %v882
        %v886 = vlaneseq
        %v887 = vshrl.u32 %v886, 7
        %v888 = vlaneseq
        %v889 = vand.u32 %v888, 127
        %vm890 = vcmp.eq.s32.totalorder %v887, %v889
        loop: start=0, step=1, limit=3
        $region145: #{tpu_custom_call.1} parent=131 // loop_pre_header
          _
        $region146: #{tpu_custom_call.1} parent=131 // loop_header
          %s892 = sphi 0, %s896
          %p893 = scmp.ge.s32.totalorder %s892, 3
        $region147: #{tpu_custom_call.1} parent=131 // loop_header_branch
          %895 = sbr.rel (%p893) target = $region151
        $region148: #{tpu_custom_call.1} parent=131 // loop_body
          %s897 = sadd.s32 %s892, 1
          %v898 = vld [vmem:[#allocation2] sm:$0xff]
          %v899 = vpack.c.bf16 %v898, %v898
          %vm900 = vcmask 23552
          %v902 = vsel %vm900, %v898, 0
          %904 = vmatprep.subr.mxu0 0.0
          %905 = vmatpush1.xpose.msra.mxu0 %v902
          %906 = vmatprep.subr.mxu0 0.0
          %907 = vmatpush1.xpose.msra.mxu0 0.0
          %908 = vmatprep.subr.mxu0 0.0
          %909 = vmatpush1.xpose.msra.mxu0 0.0
          %910 = vmatprep.subr.mxu0 0.0
          %911 = vmatpush1.xpose.msra.mxu0 0.0
          %912 = vmatprep.subr.mxu0 0.0
          %913 = vmatpush1.xpose.msra.mxu0 0.0
          %914 = vmatprep.subr.mxu0 0.0
          %915 = vmatpush1.xpose.msra.mxu0 0.0
          %916 = vmatprep.subr.mxu0 0.0
          %917 = vmatpush1.xpose.msra.mxu0 0.0
          %918 = vmatprep.subr.mxu0 0.0
          %919 = vmatpush1.xpose.msra.mxu0 0.0
          %920 = vmatprep.subr.mxu0 0.0
          %921 = vmatpush1.xpose.msra.mxu0 0.0
          %922 = vmatprep.subr.mxu0 0.0
          %923 = vmatpush1.xpose.msra.mxu0 0.0
          %924 = vmatprep.subr.mxu0 0.0
          %925 = vmatpush1.xpose.msra.mxu0 0.0
          %926 = vmatprep.subr.mxu0 0.0
          %927 = vmatpush1.xpose.msra.mxu0 0.0
          %928 = vmatprep.subr.mxu0 0.0
          %929 = vmatpush1.xpose.msra.mxu0 0.0
          %930 = vmatprep.subr.mxu0 0.0
          %931 = vmatpush1.xpose.msra.mxu0 0.0
          %932 = vmatprep.subr.mxu0 0.0
          %933 = vmatpush1.xpose.msra.mxu0 0.0
          %934 = vmatprep.subr.mxu0 0.0
          %935 = vmatpush1.xpose.msra.mxu0 0.0
          %936 = vmatprep.subr.mxu0 0.0
          %937 = vmatpush1.xpose.msra.mxu0 0.0
          %938 = vmatprep.subr.mxu0 0.0
          %939 = vmatpush1.xpose.msra.mxu0 0.0
          %940 = vmatprep.subr.mxu0 0.0
          %941 = vmatpush1.xpose.msra.mxu0 0.0
          %942 = vmatprep.subr.mxu0 0.0
          %943 = vmatpush1.xpose.msra.mxu0 0.0
          %944 = vmatprep.subr.mxu0 0.0
          %945 = vmatpush1.xpose.msra.mxu0 0.0
          %946 = vmatprep.subr.mxu0 0.0
          %947 = vmatpush1.xpose.msra.mxu0 0.0
          %948 = vmatprep.subr.mxu0 0.0
          %949 = vmatpush1.xpose.msra.mxu0 0.0
          %950 = vmatprep.subr.mxu0 0.0
          %951 = vmatpush1.xpose.msra.mxu0 0.0
          %952 = vmatprep.subr.mxu0 0.0
          %953 = vmatpush1.xpose.msra.mxu0 0.0
          %954 = vmatprep.subr.mxu0 0.0
          %955 = vmatpush1.xpose.msra.mxu0 0.0
          %956 = vmatprep.subr.mxu0 0.0
          %957 = vmatpush1.xpose.msra.mxu0 0.0
          %958 = vmatprep.subr.mxu0 0.0
          %959 = vmatpush1.xpose.msra.mxu0 0.0
          %960 = vmatprep.subr.mxu0 0.0
          %961 = vmatpush1.xpose.msra.mxu0 0.0
          %962 = vmatprep.subr.mxu0 0.0
          %963 = vmatpush1.xpose.msra.mxu0 0.0
          %964 = vmatprep.subr.mxu0 0.0
          %965 = vmatpush1.xpose.msra.mxu0 0.0
          %966 = vmatprep.subr.mxu0 0.0
          %967 = vmatpush1.xpose.msra.mxu0 0.0
          %968 = vmatprep.mubr.f32.mxu0 0.0
          %969 = vmatmul.mubr.f32.gmra.mrb[0].mxu0 %v902
          %v970 = vpop.f32.mrb[0].mxu0
          %v971 = vadd.f32 0.0, %v970
          %v972 = vpop.f32.mrb[0].mxu0
          %973 = vdwg.mxu0
          %v974 = vsel %vm890, %v971, 0.0
          %vm975 = vcmask 64512
          %v976 = vsel %vm975, %v974, 0.0
          %977 = vadd.xlane.f32.xlu0 %v976
          %v978 = vpop.xlane.xlu0 %977
          %v979 = vrot.slane %v976, 4
          %v980 = vadd.f32 %v976, %v979
          %v981 = vrot.slane %v980, 2
          %v982 = vadd.f32 %v980, %v981
          %v983 = vrot.slane %v982, 1
          %v984 = vadd.f32 %v982, %v983
          %v985 = vadd.f32 %v978, %v984
          %v986 = vmul.f32 %v971, 2.0
          %v987 = vsub.f32 %v985, %v986
          %v988 = vmax.f32 %v987, 0.0
          %v989 = vadd.f32 %v988, 1e-08
          %v990 = vrsqrt.pop %v989
          %v991 = vmul.f32 %v989, %v990
          %vm992 = vcmp.eq.f32.partialorder %v989, inf
          %v993 = vsel %vm992, %v989, %v991
          %vm994 = vcmp.eq.f32.partialorder %v989, 0.0
          %v995 = vand.u32 %v989, 2147483648
          %v996 = vsel %vm994, %v995, %v993
          %v997 = vmul.f32 %v996, -0.2
          %v998 = vmul.f32 %v997, 1.442695
          %v999 = vpow.pop %v998
          %v1000 = vsel %vm890, 0.0, %v999
          %v1001 = vsel %vm975, %v1000, 0.0
          %1002 = vadd.xlane.f32.xlu0 %v1001
          %v1003 = vpop.xlane.xlu0 %1002
          %v1004 = vadd.f32 %v1003, 1e-08
          %v1005 = vrcp.pop %v1004
          %v1006 = vmul.f32 %v1000, %v1005
          %v1007 = vpack.c.bf16 %v1006, %v1006
          %v1008 = vld [vmem:[#allocation3] sm:$0x7]
          %v1009 = vld [vmem:[%s2] sm:$0x1]
          %v1010 = vld [vmem:[%s3] sm:$0x1]
          %v1011 = vld [vmem:[#allocation5] sm:$0x1]
          %v1012 = vld [vmem:[#allocation7] sm:$0x1]
          %v1014 = vsel %vm883, %v899, 0
          %vm1016 = vcmask 1042432
          %v1018 = vsel %vm1016, %v1008, 0
          %1020 = vmatprep.subr.bf16.mxu0 0
          %1021 = vmatpush1.bf16.msra.mxu0 %v1018
          %1022 = vmatprep.subr.bf16.mxu0 0
          %1023 = vmatpush1.bf16.msra.mxu0 0
          %1024 = vmatprep.subr.bf16.mxu0 0
          %1025 = vmatpush1.bf16.msra.mxu0 0
          %1026 = vmatprep.subr.bf16.mxu0 0
          %1027 = vmatpush1.bf16.msra.mxu0 0
          %1028 = vmatprep.subr.bf16.mxu0 0
          %1029 = vmatpush1.bf16.msra.mxu0 0
          %1030 = vmatprep.subr.bf16.mxu0 0
          %1031 = vmatpush1.bf16.msra.mxu0 0
          %1032 = vmatprep.subr.bf16.mxu0 0
          %1033 = vmatpush1.bf16.msra.mxu0 0
          %1034 = vmatprep.subr.bf16.mxu0 0
          %1035 = vmatpush1.bf16.msra.mxu0 0
          %1036 = vmatprep.subr.bf16.mxu0 0
          %1037 = vmatpush1.bf16.msra.mxu0 0
          %1038 = vmatprep.subr.bf16.mxu0 0
          %1039 = vmatpush1.bf16.msra.mxu0 0
          %1040 = vmatprep.subr.bf16.mxu0 0
          %1041 = vmatpush1.bf16.msra.mxu0 0
          %1042 = vmatprep.subr.bf16.mxu0 0
          %1043 = vmatpush1.bf16.msra.mxu0 0
          %1044 = vmatprep.subr.bf16.mxu0 0
          %1045 = vmatpush1.bf16.msra.mxu0 0
          %1046 = vmatprep.subr.bf16.mxu0 0
          %1047 = vmatpush1.bf16.msra.mxu0 0
          %1048 = vmatprep.subr.bf16.mxu0 0
          %1049 = vmatpush1.bf16.msra.mxu0 0
          %1050 = vmatprep.subr.bf16.mxu0 0
          %1051 = vmatpush1.bf16.msra.mxu0 0
          %1052 = vmatprep.mubr.bf16.mxu0 0
          %1053 = vmatmul.mubr.bf16.gmra.mrb[0].mxu0 %v1014
          %v1054 = vpop.f32.mrb[0].mxu0
          %v1055 = vadd.f32 0.0, %v1054
          %v1056 = vpop.f32.mrb[0].mxu0
          %v1057 = vpop.f32.mrb[0].mxu0
          %v1058 = vpop.f32.mrb[0].mxu0
          %1059 = vdwg.mxu0
          %v1061 = vlaneseq
          %v1062 = vshrl.u32 %v1061, 7
          %v1063 = vsub.s32 0, %v1062
          %v1064 = vrot.slane %v1009, %v1063
          %v1066 = vadd.f32 %v1055, %v1064
          %v1068 = vlaneseq
          %v1069 = vshrl.u32 %v1068, 7
          %v1070 = vsub.s32 0, %v1069
          %v1071 = vrot.slane %v1010, %v1070
          %1072 = vrot.lane.b32.xlu0 %v1071, 32
          %v1073 = vpop.permute.xlu0 %1072
          %v1075 = vadd.f32 %v1055, %v1073
          %v1076 = vpack.c.bf16 %v1075, %v1075
          %1078 = vrot.lane.b32.xlu0 %v1076, 96
          %v1079 = vpop.permute.xlu0 %1078
          %v1081 = vsel %vm975, %v1007, 0
          %vm1083 = vcmask 1043456
          %v1085 = vsel %vm1083, %v1079, 0
          %1087 = vmatprep.subr.bf16.mxu0 0
          %1088 = vmatpush1.bf16.msra.mxu0 %v1085
          %1089 = vmatprep.subr.bf16.mxu0 0
          %1090 = vmatpush1.bf16.msra.mxu0 0
          %1091 = vmatprep.subr.bf16.mxu0 0
          %1092 = vmatpush1.bf16.msra.mxu0 0
          %1093 = vmatprep.subr.bf16.mxu0 0
          %1094 = vmatpush1.bf16.msra.mxu0 0
          %1095 = vmatprep.subr.bf16.mxu0 0
          %1096 = vmatpush1.bf16.msra.mxu0 0
          %1097 = vmatprep.subr.bf16.mxu0 0
          %1098 = vmatpush1.bf16.msra.mxu0 0
          %1099 = vmatprep.subr.bf16.mxu0 0
          %1100 = vmatpush1.bf16.msra.mxu0 0
          %1101 = vmatprep.subr.bf16.mxu0 0
          %1102 = vmatpush1.bf16.msra.mxu0 0
          %1103 = vmatprep.subr.bf16.mxu0 0
          %1104 = vmatpush1.bf16.msra.mxu0 0
          %1105 = vmatprep.subr.bf16.mxu0 0
          %1106 = vmatpush1.bf16.msra.mxu0 0
          %1107 = vmatprep.subr.bf16.mxu0 0
          %1108 = vmatpush1.bf16.msra.mxu0 0
          %1109 = vmatprep.subr.bf16.mxu0 0
          %1110 = vmatpush1.bf16.msra.mxu0 0
          %1111 = vmatprep.subr.bf16.mxu0 0
          %1112 = vmatpush1.bf16.msra.mxu0 0
          %1113 = vmatprep.subr.bf16.mxu0 0
          %1114 = vmatpush1.bf16.msra.mxu0 0
          %1115 = vmatprep.subr.bf16.mxu0 0
          %1116 = vmatpush1.bf16.msra.mxu0 0
          %1117 = vmatprep.subr.bf16.mxu0 0
          %1118 = vmatpush1.bf16.msra.mxu0 0
          %1119 = vmatprep.mubr.bf16.mxu0 0
          %1120 = vmatmul.mubr.bf16.gmra.mrb[0].mxu0 %v1081
          %v1121 = vpop.f32.mrb[0].mxu0
          %v1122 = vadd.f32 0.0, %v1121
          %v1123 = vpop.f32.mrb[0].mxu0
          %v1124 = vpop.f32.mrb[0].mxu0
          %v1125 = vpop.f32.mrb[0].mxu0
          %1126 = vdwg.mxu0
          %v1127 = vadd.f32 %v1066, %v1122
          %vm1128 = vcmask 261120
          %v1129 = vsel %vm1128, %v1127, 0.0
          %1130 = vadd.xlane.f32.xlu0 %v1129
          %v1131 = vpop.xlane.xlu0 %1130
          %v1132 = vrcp.pop 32.0
          %v1133 = vmul.f32 %v1131, %v1132
          %v1134 = vmul.f32 %v1127, %v1127
          %v1135 = vsel %vm1128, %v1134, 0.0
          %1136 = vadd.xlane.f32.xlu0 %v1135
          %v1137 = vpop.xlane.xlu0 %1136
          %v1138 = vmul.f32 %v1137, %v1132
          %v1139 = vmul.f32 %v1133, %v1133
          %v1140 = vsub.f32 %v1138, %v1139
          %v1141 = vmax.f32 %v1140, 0.0
          %v1142 = vsub.f32 %v1127, %v1133
          %v1143 = vadd.f32 %v1141, 1e-05
          %v1144 = vrsqrt.pop %v1143
          %v1145 = vmul.f32 %v1142, %v1144
          %v1147 = vlaneseq
          %v1148 = vshrl.u32 %v1147, 7
          %v1149 = vsub.s32 0, %v1148
          %v1150 = vrot.slane %v1011, %v1149
          %v1152 = vmul.f32 %v1150, %v1145
          %v1154 = vlaneseq
          %v1155 = vshrl.u32 %v1154, 7
          %v1156 = vsub.s32 0, %v1155
          %v1157 = vrot.slane %v1012, %v1156
          %v1159 = vadd.f32 %v1152, %v1157
          %v1160 = vmax.f32 %v1159, 0.0
          %v1161 = vld [vmem:[%s6] sm:$0xf]
          %v1162 = vld [vmem:[%s6 + $0x4] sm:$0xf]
          %v1163 = vld [vmem:[%s6 + $0x8] sm:$0xf]
          %v1164 = vld [vmem:[%s6 + $0xc] sm:$0xf]
          %v1165 = vld [vmem:[%s7] sm:$0x1]
          %v1166 = vld [vmem:[%s8] sm:$0x1]
          %v1167 = vld [vmem:[%s9] sm:$0x1]
          %v1168 = vld [vmem:[%s10] sm:$0x1]
          %v1169 = vpack.c.bf16 %v1160, %v1160
          %v1174 = vunpack.c.l.b16 %v1161
          %v1175 = vunpack.c.l.b16 %v1162
          %v1176 = vunpack.c.l.b16 %v1163
          %v1177 = vunpack.c.l.b16 %v1164
          %v1178 = vpack.c.b16 %v1175, %v1174
          %v1179 = vpack.c.b16 %v1177, %v1176
          %v1183 = vsel %vm1128, %v1169, 0
          %1185 = vmatprep.subr.bf16.mxu0 0
          %1186 = vmatpush1.bf16.msra.mxu0 %v1178
          %1187 = vmatprep.subr.bf16.mxu0 0
          %1188 = vmatpush1.bf16.msra.mxu0 %v1179
          %1189 = vmatprep.subr.bf16.mxu0 0
          %1190 = vmatpush1.bf16.msra.mxu0 0
          %1191 = vmatprep.subr.bf16.mxu0 0
          %1192 = vmatpush1.bf16.msra.mxu0 0
          %1193 = vmatprep.subr.bf16.mxu0 0
          %1194 = vmatpush1.bf16.msra.mxu0 0
          %1195 = vmatprep.subr.bf16.mxu0 0
          %1196 = vmatpush1.bf16.msra.mxu0 0
          %1197 = vmatprep.subr.bf16.mxu0 0
          %1198 = vmatpush1.bf16.msra.mxu0 0
          %1199 = vmatprep.subr.bf16.mxu0 0
          %1200 = vmatpush1.bf16.msra.mxu0 0
          %1201 = vmatprep.subr.bf16.mxu0 0
          %1202 = vmatpush1.bf16.msra.mxu0 0
          %1203 = vmatprep.subr.bf16.mxu0 0
          %1204 = vmatpush1.bf16.msra.mxu0 0
          %1205 = vmatprep.subr.bf16.mxu0 0
          %1206 = vmatpush1.bf16.msra.mxu0 0
          %1207 = vmatprep.subr.bf16.mxu0 0
          %1208 = vmatpush1.bf16.msra.mxu0 0
          %1209 = vmatprep.subr.bf16.mxu0 0
          %1210 = vmatpush1.bf16.msra.mxu0 0
          %1211 = vmatprep.subr.bf16.mxu0 0
          %1212 = vmatpush1.bf16.msra.mxu0 0
          %1213 = vmatprep.subr.bf16.mxu0 0
          %1214 = vmatpush1.bf16.msra.mxu0 0
          %1215 = vmatprep.subr.bf16.mxu0 0
          %1216 = vmatpush1.bf16.msra.mxu0 0
          %1217 = vmatprep.mubr.bf16.mxu0 0
          %1218 = vmatmul.mubr.bf16.gmra.mrb[0].mxu0 %v1183
          %v1219 = vpop.f32.mrb[0].mxu0
          %v1220 = vadd.f32 0.0, %v1219
          %v1221 = vpop.f32.mrb[0].mxu0
          %v1222 = vpop.f32.mrb[0].mxu0
          %v1223 = vpop.f32.mrb[0].mxu0
          %1224 = vdwg.mxu0
          %v1226 = vlaneseq
          %v1227 = vshrl.u32 %v1226, 7
          %v1228 = vsub.s32 0, %v1227
          %v1229 = vrot.slane %v1165, %v1228
          %v1231 = vadd.f32 %v1220, %v1229
          %v1233 = vlaneseq
          %v1234 = vshrl.u32 %v1233, 7
          %v1235 = vsub.s32 0, %v1234
          %v1236 = vrot.slane %v1166, %v1235
          %1237 = vrot.lane.b32.xlu0 %v1236, 32
          %v1238 = vpop.permute.xlu0 %1237
          %v1240 = vadd.f32 %v1220, %v1238
          %v1241 = vpack.c.bf16 %v1240, %v1240
          %1243 = vrot.lane.b32.xlu0 %v1241, 96
          %v1244 = vpop.permute.xlu0 %1243
          %v1246 = vsel %vm1083, %v1244, 0
          %1248 = vmatprep.subr.bf16.mxu0 0
          %1249 = vmatpush1.bf16.msra.mxu0 %v1246
          %1250 = vmatprep.subr.bf16.mxu0 0
          %1251 = vmatpush1.bf16.msra.mxu0 0
          %1252 = vmatprep.subr.bf16.mxu0 0
          %1253 = vmatpush1.bf16.msra.mxu0 0
          %1254 = vmatprep.subr.bf16.mxu0 0
          %1255 = vmatpush1.bf16.msra.mxu0 0
          %1256 = vmatprep.subr.bf16.mxu0 0
          %1257 = vmatpush1.bf16.msra.mxu0 0
          %1258 = vmatprep.subr.bf16.mxu0 0
          %1259 = vmatpush1.bf16.msra.mxu0 0
          %1260 = vmatprep.subr.bf16.mxu0 0
          %1261 = vmatpush1.bf16.msra.mxu0 0
          %1262 = vmatprep.subr.bf16.mxu0 0
          %1263 = vmatpush1.bf16.msra.mxu0 0
          %1264 = vmatprep.subr.bf16.mxu0 0
          %1265 = vmatpush1.bf16.msra.mxu0 0
          %1266 = vmatprep.subr.bf16.mxu0 0
          %1267 = vmatpush1.bf16.msra.mxu0 0
          %1268 = vmatprep.subr.bf16.mxu0 0
          %1269 = vmatpush1.bf16.msra.mxu0 0
          %1270 = vmatprep.subr.bf16.mxu0 0
          %1271 = vmatpush1.bf16.msra.mxu0 0
          %1272 = vmatprep.subr.bf16.mxu0 0
          %1273 = vmatpush1.bf16.msra.mxu0 0
          %1274 = vmatprep.subr.bf16.mxu0 0
          %1275 = vmatpush1.bf16.msra.mxu0 0
          %1276 = vmatprep.subr.bf16.mxu0 0
          %1277 = vmatpush1.bf16.msra.mxu0 0
          %1278 = vmatprep.subr.bf16.mxu0 0
          %1279 = vmatpush1.bf16.msra.mxu0 0
          %1280 = vmatprep.mubr.bf16.mxu0 0
          %1281 = vmatmul.mubr.bf16.gmra.mrb[0].mxu0 %v1081
          %v1282 = vpop.f32.mrb[0].mxu0
          %v1283 = vadd.f32 0.0, %v1282
          %v1284 = vpop.f32.mrb[0].mxu0
          %v1285 = vpop.f32.mrb[0].mxu0
          %v1286 = vpop.f32.mrb[0].mxu0
          %1287 = vdwg.mxu0
          %v1288 = vadd.f32 %v1231, %v1283
          %v1289 = vsel %vm1128, %v1288, 0.0
          %1290 = vadd.xlane.f32.xlu0 %v1289
          %v1291 = vpop.xlane.xlu0 %1290
          %v1292 = vmul.f32 %v1291, %v1132
          %v1293 = vmul.f32 %v1288, %v1288
          %v1294 = vsel %vm1128, %v1293, 0.0
          %1295 = vadd.xlane.f32.xlu0 %v1294
          %v1296 = vpop.xlane.xlu0 %1295
          %v1297 = vmul.f32 %v1296, %v1132
          %v1298 = vmul.f32 %v1292, %v1292
          %v1299 = vsub.f32 %v1297, %v1298
          %v1300 = vmax.f32 %v1299, 0.0
          %v1301 = vsub.f32 %v1288, %v1292
          %v1302 = vadd.f32 %v1300, 1e-05
          %v1303 = vrsqrt.pop %v1302
          %v1304 = vmul.f32 %v1301, %v1303
          %v1306 = vlaneseq
          %v1307 = vshrl.u32 %v1306, 7
          %v1308 = vsub.s32 0, %v1307
          %v1309 = vrot.slane %v1167, %v1308
          %v1311 = vmul.f32 %v1309, %v1304
          %v1313 = vlaneseq
          %v1314 = vshrl.u32 %v1313, 7
          %v1315 = vsub.s32 0, %v1314
          %v1316 = vrot.slane %v1168, %v1315
          %v1318 = vadd.f32 %v1311, %v1316
          %v1319 = vmax.f32 %v1318, 0.0
          %v1320 = vld [vmem:[%s11] sm:$0xf]
          %v1321 = vld [vmem:[%s11 + $0x4] sm:$0xf]
          %v1322 = vld [vmem:[%s11 + $0x8] sm:$0xf]
          %v1323 = vld [vmem:[%s11 + $0xc] sm:$0xf]
          %v1324 = vld [vmem:[%s12] sm:$0x1]
          %v1325 = vld [vmem:[%s13] sm:$0x1]
          %v1326 = vld [vmem:[%s14] sm:$0x1]
          %v1327 = vld [vmem:[%s15] sm:$0x1]
          %v1328 = vpack.c.bf16 %v1319, %v1319
          %v1333 = vunpack.c.l.b16 %v1320
          %v1334 = vunpack.c.l.b16 %v1321
          %v1335 = vunpack.c.l.b16 %v1322
          %v1336 = vunpack.c.l.b16 %v1323
          %v1337 = vpack.c.b16 %v1334, %v1333
          %v1338 = vpack.c.b16 %v1336, %v1335
          %v1342 = vsel %vm1128, %v1328, 0
          %1344 = vmatprep.subr.bf16.mxu0 0
          %1345 = vmatpush1.bf16.msra.mxu0 %v1337
          %1346 = vmatprep.subr.bf16.mxu0 0
          %1347 = vmatpush1.bf16.msra.mxu0 %v1338
          %1348 = vmatprep.subr.bf16.mxu0 0
          %1349 = vmatpush1.bf16.msra.mxu0 0
          %1350 = vmatprep.subr.bf16.mxu0 0
          %1351 = vmatpush1.bf16.msra.mxu0 0
          %1352 = vmatprep.subr.bf16.mxu0 0
          %1353 = vmatpush1.bf16.msra.mxu0 0
          %1354 = vmatprep.subr.bf16.mxu0 0
          %1355 = vmatpush1.bf16.msra.mxu0 0
          %1356 = vmatprep.subr.bf16.mxu0 0
          %1357 = vmatpush1.bf16.msra.mxu0 0
          %1358 = vmatprep.subr.bf16.mxu0 0
          %1359 = vmatpush1.bf16.msra.mxu0 0
          %1360 = vmatprep.subr.bf16.mxu0 0
          %1361 = vmatpush1.bf16.msra.mxu0 0
          %1362 = vmatprep.subr.bf16.mxu0 0
          %1363 = vmatpush1.bf16.msra.mxu0 0
          %1364 = vmatprep.subr.bf16.mxu0 0
          %1365 = vmatpush1.bf16.msra.mxu0 0
          %1366 = vmatprep.subr.bf16.mxu0 0
          %1367 = vmatpush1.bf16.msra.mxu0 0
          %1368 = vmatprep.subr.bf16.mxu0 0
          %1369 = vmatpush1.bf16.msra.mxu0 0
          %1370 = vmatprep.subr.bf16.mxu0 0
          %1371 = vmatpush1.bf16.msra.mxu0 0
          %1372 = vmatprep.subr.bf16.mxu0 0
          %1373 = vmatpush1.bf16.msra.mxu0 0
          %1374 = vmatprep.subr.bf16.mxu0 0
          %1375 = vmatpush1.bf16.msra.mxu0 0
          %1376 = vmatprep.mubr.bf16.mxu0 0
          %1377 = vmatmul.mubr.bf16.gmra.mrb[0].mxu0 %v1342
          %v1378 = vpop.f32.mrb[0].mxu0
          %v1379 = vadd.f32 0.0, %v1378
          %v1380 = vpop.f32.mrb[0].mxu0
          %v1381 = vpop.f32.mrb[0].mxu0
          %v1382 = vpop.f32.mrb[0].mxu0
          %1383 = vdwg.mxu0
          %v1385 = vlaneseq
          %v1386 = vshrl.u32 %v1385, 7
          %v1387 = vsub.s32 0, %v1386
          %v1388 = vrot.slane %v1324, %v1387
          %v1390 = vadd.f32 %v1379, %v1388
          %v1392 = vlaneseq
          %v1393 = vshrl.u32 %v1392, 7
          %v1394 = vsub.s32 0, %v1393
          %v1395 = vrot.slane %v1325, %v1394
          %1396 = vrot.lane.b32.xlu0 %v1395, 32
          %v1397 = vpop.permute.xlu0 %1396
          %v1399 = vadd.f32 %v1379, %v1397
          %v1400 = vpack.c.bf16 %v1399, %v1399
          %1402 = vrot.lane.b32.xlu0 %v1400, 96
          %v1403 = vpop.permute.xlu0 %1402
          %v1405 = vsel %vm1083, %v1403, 0
          %1407 = vmatprep.subr.bf16.mxu0 0
          %1408 = vmatpush1.bf16.msra.mxu0 %v1405
          %1409 = vmatprep.subr.bf16.mxu0 0
          %1410 = vmatpush1.bf16.msra.mxu0 0
          %1411 = vmatprep.subr.bf16.mxu0 0
          %1412 = vmatpush1.bf16.msra.mxu0 0
          %1413 = vmatprep.subr.bf16.mxu0 0
          %1414 = vmatpush1.bf16.msra.mxu0 0
          %1415 = vmatprep.subr.bf16.mxu0 0
          %1416 = vmatpush1.bf16.msra.mxu0 0
          %1417 = vmatprep.subr.bf16.mxu0 0
          %1418 = vmatpush1.bf16.msra.mxu0 0
          %1419 = vmatprep.subr.bf16.mxu0 0
          %1420 = vmatpush1.bf16.msra.mxu0 0
          %1421 = vmatprep.subr.bf16.mxu0 0
          %1422 = vmatpush1.bf16.msra.mxu0 0
          %1423 = vmatprep.subr.bf16.mxu0 0
          %1424 = vmatpush1.bf16.msra.mxu0 0
          %1425 = vmatprep.subr.bf16.mxu0 0
          %1426 = vmatpush1.bf16.msra.mxu0 0
          %1427 = vmatprep.subr.bf16.mxu0 0
          %1428 = vmatpush1.bf16.msra.mxu0 0
          %1429 = vmatprep.subr.bf16.mxu0 0
          %1430 = vmatpush1.bf16.msra.mxu0 0
          %1431 = vmatprep.subr.bf16.mxu0 0
          %1432 = vmatpush1.bf16.msra.mxu0 0
          %1433 = vmatprep.subr.bf16.mxu0 0
          %1434 = vmatpush1.bf16.msra.mxu0 0
          %1435 = vmatprep.subr.bf16.mxu0 0
          %1436 = vmatpush1.bf16.msra.mxu0 0
          %1437 = vmatprep.subr.bf16.mxu0 0
          %1438 = vmatpush1.bf16.msra.mxu0 0
          %1439 = vmatprep.mubr.bf16.mxu0 0
          %1440 = vmatmul.mubr.bf16.gmra.mrb[0].mxu0 %v1081
          %v1441 = vpop.f32.mrb[0].mxu0
          %v1442 = vadd.f32 0.0, %v1441
          %v1443 = vpop.f32.mrb[0].mxu0
          %v1444 = vpop.f32.mrb[0].mxu0
          %v1445 = vpop.f32.mrb[0].mxu0
          %1446 = vdwg.mxu0
          %v1447 = vadd.f32 %v1390, %v1442
          %v1448 = vsel %vm1128, %v1447, 0.0
          %1449 = vadd.xlane.f32.xlu0 %v1448
          %v1450 = vpop.xlane.xlu0 %1449
          %v1451 = vmul.f32 %v1450, %v1132
          %v1452 = vmul.f32 %v1447, %v1447
          %v1453 = vsel %vm1128, %v1452, 0.0
          %1454 = vadd.xlane.f32.xlu0 %v1453
          %v1455 = vpop.xlane.xlu0 %1454
          %v1456 = vmul.f32 %v1455, %v1132
          %v1457 = vmul.f32 %v1451, %v1451
          %v1458 = vsub.f32 %v1456, %v1457
          %v1459 = vmax.f32 %v1458, 0.0
          %v1460 = vsub.f32 %v1447, %v1451
          %v1461 = vadd.f32 %v1459, 1e-05
          %v1462 = vrsqrt.pop %v1461
          %v1463 = vmul.f32 %v1460, %v1462
          %v1465 = vlaneseq
          %v1466 = vshrl.u32 %v1465, 7
          %v1467 = vsub.s32 0, %v1466
          %v1468 = vrot.slane %v1326, %v1467
          %v1470 = vmul.f32 %v1468, %v1463
          %v1472 = vlaneseq
          %v1473 = vshrl.u32 %v1472, 7
          %v1474 = vsub.s32 0, %v1473
          %v1475 = vrot.slane %v1327, %v1474
          %v1477 = vadd.f32 %v1470, %v1475
          %v1478 = vpack.c.bf16 %v1477, %v1477
          %v1479 = vld [vmem:[%s16] sm:$0x7]
          %v1480 = vld [vmem:[%s17] sm:$0xf]
          %v1481 = vld [vmem:[%s17 + $0x4] sm:$0xf]
          %v1482 = vld [vmem:[%s17 + $0x8] sm:$0xf]
          %v1483 = vld [vmem:[%s17 + $0xc] sm:$0xf]
          %v1484 = vld [vmem:[%s18] sm:$0x1]
          %v1485 = vld [vmem:[%s19] sm:$0xf]
          %v1486 = vld [vmem:[%s19 + $0x4] sm:$0xf]
          %v1487 = vld [vmem:[%s19 + $0x8] sm:$0xf]
          %v1488 = vld [vmem:[%s19 + $0xc] sm:$0xf]
          %v1489 = vld [vmem:[%s20] sm:$0x1]
          %v1494 = vunpack.c.l.b16 %v1480
          %v1495 = vunpack.c.l.b16 %v1481
          %v1496 = vunpack.c.l.b16 %v1482
          %v1497 = vunpack.c.l.b16 %v1483
          %v1498 = vpack.c.b16 %v1495, %v1494
          %v1499 = vpack.c.b16 %v1497, %v1496
          %v1503 = vsel %vm1128, %v1478, 0
          %1505 = vmatprep.subr.bf16.mxu0 0
          %1506 = vmatpush1.bf16.msra.mxu0 %v1498
          %1507 = vmatprep.subr.bf16.mxu0 0
          %1508 = vmatpush1.bf16.msra.mxu0 %v1499
          %1509 = vmatprep.subr.bf16.mxu0 0
          %1510 = vmatpush1.bf16.msra.mxu0 0
          %1511 = vmatprep.subr.bf16.mxu0 0
          %1512 = vmatpush1.bf16.msra.mxu0 0
          %1513 = vmatprep.subr.bf16.mxu0 0
          %1514 = vmatpush1.bf16.msra.mxu0 0
          %1515 = vmatprep.subr.bf16.mxu0 0
          %1516 = vmatpush1.bf16.msra.mxu0 0
          %1517 = vmatprep.subr.bf16.mxu0 0
          %1518 = vmatpush1.bf16.msra.mxu0 0
          %1519 = vmatprep.subr.bf16.mxu0 0
          %1520 = vmatpush1.bf16.msra.mxu0 0
          %1521 = vmatprep.subr.bf16.mxu0 0
          %1522 = vmatpush1.bf16.msra.mxu0 0
          %1523 = vmatprep.subr.bf16.mxu0 0
          %1524 = vmatpush1.bf16.msra.mxu0 0
          %1525 = vmatprep.subr.bf16.mxu0 0
          %1526 = vmatpush1.bf16.msra.mxu0 0
          %1527 = vmatprep.subr.bf16.mxu0 0
          %1528 = vmatpush1.bf16.msra.mxu0 0
          %1529 = vmatprep.subr.bf16.mxu0 0
          %1530 = vmatpush1.bf16.msra.mxu0 0
          %1531 = vmatprep.subr.bf16.mxu0 0
          %1532 = vmatpush1.bf16.msra.mxu0 0
          %1533 = vmatprep.subr.bf16.mxu0 0
          %1534 = vmatpush1.bf16.msra.mxu0 0
          %1535 = vmatprep.subr.bf16.mxu0 0
          %1536 = vmatpush1.bf16.msra.mxu0 0
          %1537 = vmatprep.mubr.bf16.mxu0 0
          %1538 = vmatmul.mubr.bf16.gmra.mrb[0].mxu0 %v1503
          %v1539 = vpop.f32.mrb[0].mxu0
          %v1540 = vadd.f32 0.0, %v1539
          %v1541 = vpop.f32.mrb[0].mxu0
          %v1542 = vpop.f32.mrb[0].mxu0
          %v1543 = vpop.f32.mrb[0].mxu0
          %1544 = vdwg.mxu0
          %v1546 = vsel %vm1016, %v1479, 0
          %1548 = vmatprep.subr.bf16.mxu0 0
          %1549 = vmatpush1.bf16.msra.mxu0 %v1546
          %1550 = vmatprep.subr.bf16.mxu0 0
          %1551 = vmatpush1.bf16.msra.mxu0 0
          %1552 = vmatprep.subr.bf16.mxu0 0
          %1553 = vmatpush1.bf16.msra.mxu0 0
          %1554 = vmatprep.subr.bf16.mxu0 0
          %1555 = vmatpush1.bf16.msra.mxu0 0
          %1556 = vmatprep.subr.bf16.mxu0 0
          %1557 = vmatpush1.bf16.msra.mxu0 0
          %1558 = vmatprep.subr.bf16.mxu0 0
          %1559 = vmatpush1.bf16.msra.mxu0 0
          %1560 = vmatprep.subr.bf16.mxu0 0
          %1561 = vmatpush1.bf16.msra.mxu0 0
          %1562 = vmatprep.subr.bf16.mxu0 0
          %1563 = vmatpush1.bf16.msra.mxu0 0
          %1564 = vmatprep.subr.bf16.mxu0 0
          %1565 = vmatpush1.bf16.msra.mxu0 0
          %1566 = vmatprep.subr.bf16.mxu0 0
          %1567 = vmatpush1.bf16.msra.mxu0 0
          %1568 = vmatprep.subr.bf16.mxu0 0
          %1569 = vmatpush1.bf16.msra.mxu0 0
          %1570 = vmatprep.subr.bf16.mxu0 0
          %1571 = vmatpush1.bf16.msra.mxu0 0
          %1572 = vmatprep.subr.bf16.mxu0 0
          %1573 = vmatpush1.bf16.msra.mxu0 0
          %1574 = vmatprep.subr.bf16.mxu0 0
          %1575 = vmatpush1.bf16.msra.mxu0 0
          %1576 = vmatprep.subr.bf16.mxu0 0
          %1577 = vmatpush1.bf16.msra.mxu0 0
          %1578 = vmatprep.subr.bf16.mxu0 0
          %1579 = vmatpush1.bf16.msra.mxu0 0
          %1580 = vmatprep.mubr.bf16.mxu0 0
          %1581 = vmatmul.mubr.bf16.gmra.mrb[0].mxu0 %v1014
          %v1582 = vpop.f32.mrb[0].mxu0
          %v1583 = vadd.f32 %v1540, %v1582
          %v1584 = vpop.f32.mrb[0].mxu0
          %v1585 = vpop.f32.mrb[0].mxu0
          %v1586 = vpop.f32.mrb[0].mxu0
          %1587 = vdwg.mxu0
          %v1589 = vlaneseq
          %v1590 = vshrl.u32 %v1589, 7
          %v1591 = vsub.s32 0, %v1590
          %v1592 = vrot.slane %v1484, %v1591
          %v1594 = vadd.f32 %v1583, %v1592
          %v1595 = vmax.f32 %v1594, 0.0
          %v1596 = vpack.c.bf16 %v1595, %v1595
          %v1598 = vlaneseq
          %v1599 = vshrl.u32 %v1598, 7
          %v1600 = vsub.s32 0, %v1599
          %v1601 = vrot.slane %v1489, %v1600
          %v1607 = vunpack.c.l.b16 %v1485
          %v1608 = vunpack.c.l.b16 %v1486
          %v1609 = vunpack.c.l.b16 %v1487
          %v1610 = vunpack.c.l.b16 %v1488
          %v1611 = vpack.c.b16 %v1608, %v1607
          %v1612 = vpack.c.b16 %v1610, %v1609
          %v1616 = vsel %vm1128, %v1596, 0
          %1618 = vmatprep.subr.bf16.mxu0 0
          %1619 = vmatpush1.bf16.msra.mxu0 %v1611
          %1620 = vmatprep.subr.bf16.mxu0 0
          %1621 = vmatpush1.bf16.msra.mxu0 %v1612
          %1622 = vmatprep.subr.bf16.mxu0 0
          %1623 = vmatpush1.bf16.msra.mxu0 0
          %1624 = vmatprep.subr.bf16.mxu0 0
          %1625 = vmatpush1.bf16.msra.mxu0 0
          %1626 = vmatprep.subr.bf16.mxu0 0
          %1627 = vmatpush1.bf16.msra.mxu0 0
          %1628 = vmatprep.subr.bf16.mxu0 0
          %1629 = vmatpush1.bf16.msra.mxu0 0
          %1630 = vmatprep.subr.bf16.mxu0 0
          %1631 = vmatpush1.bf16.msra.mxu0 0
          %1632 = vmatprep.subr.bf16.mxu0 0
          %1633 = vmatpush1.bf16.msra.mxu0 0
          %1634 = vmatprep.subr.bf16.mxu0 0
          %1635 = vmatpush1.bf16.msra.mxu0 0
          %1636 = vmatprep.subr.bf16.mxu0 0
          %1637 = vmatpush1.bf16.msra.mxu0 0
          %1638 = vmatprep.subr.bf16.mxu0 0
          %1639 = vmatpush1.bf16.msra.mxu0 0
          %1640 = vmatprep.subr.bf16.mxu0 0
          %1641 = vmatpush1.bf16.msra.mxu0 0
          %1642 = vmatprep.subr.bf16.mxu0 0
          %1643 = vmatpush1.bf16.msra.mxu0 0
          %1644 = vmatprep.subr.bf16.mxu0 0
          %1645 = vmatpush1.bf16.msra.mxu0 0
          %1646 = vmatprep.subr.bf16.mxu0 0
          %1647 = vmatpush1.bf16.msra.mxu0 0
          %1648 = vmatprep.subr.bf16.mxu0 0
          %1649 = vmatpush1.bf16.msra.mxu0 0
          %1650 = vmatprep.mubr.bf16.mxu0 0
          %1651 = vmatmul.mubr.bf16.gmra.mrb[0].mxu0 %v1616
          %v1652 = vpop.f32.mrb[0].mxu0
          %v1653 = vadd.f32 %v1601, %v1652
          %v1654 = vpop.f32.mrb[0].mxu0
          %v1655 = vpop.f32.mrb[0].mxu0
          %v1656 = vpop.f32.mrb[0].mxu0
          %1657 = vdwg.mxu0
          %v1658 = vld [vmem:[%s21] sm:$0x7]
          %v1659 = vld [vmem:[%s22] sm:$0x7]
          %v1660 = vld [vmem:[%s23] sm:$0x1]
          %v1661 = vld [vmem:[%s24] sm:$0xf]
          %v1662 = vld [vmem:[%s24 + $0x4] sm:$0xf]
          %v1663 = vld [vmem:[%s24 + $0x8] sm:$0xf]
          %v1664 = vld [vmem:[%s24 + $0xc] sm:$0xf]
          %v1665 = vld [vmem:[%s25] sm:$0x1]
          %v1666 = vld [vmem:[%s26] sm:$0xf]
          %v1667 = vld [vmem:[%s26 + $0x4] sm:$0xf]
          %v1668 = vld [vmem:[%s26 + $0x8] sm:$0xf]
          %v1669 = vld [vmem:[%s26 + $0xc] sm:$0xf]
          %v1670 = vld [vmem:[%s27] sm:$0x1]
          %v1671 = vpack.c.bf16 %v1653, %v1653
          %v1673 = vsel %vm883, %v1671, 0
          %v1676 = vsel %vm1016, %v1659, 0
          %1678 = vmatprep.subr.bf16.mxu0 0
          %1679 = vmatpush1.bf16.msra.mxu0 %v1676
          %1680 = vmatprep.subr.bf16.mxu0 0
          %1681 = vmatpush1.bf16.msra.mxu0 0
          %1682 = vmatprep.subr.bf16.mxu0 0
          %1683 = vmatpush1.bf16.msra.mxu0 0
          %1684 = vmatprep.subr.bf16.mxu0 0
          %1685 = vmatpush1.bf16.msra.mxu0 0
          %1686 = vmatprep.subr.bf16.mxu0 0
          %1687 = vmatpush1.bf16.msra.mxu0 0
          %1688 = vmatprep.subr.bf16.mxu0 0
          %1689 = vmatpush1.bf16.msra.mxu0 0
          %1690 = vmatprep.subr.bf16.mxu0 0
          %1691 = vmatpush1.bf16.msra.mxu0 0
          %1692 = vmatprep.subr.bf16.mxu0 0
          %1693 = vmatpush1.bf16.msra.mxu0 0
          %1694 = vmatprep.subr.bf16.mxu0 0
          %1695 = vmatpush1.bf16.msra.mxu0 0
          %1696 = vmatprep.subr.bf16.mxu0 0
          %1697 = vmatpush1.bf16.msra.mxu0 0
          %1698 = vmatprep.subr.bf16.mxu0 0
          %1699 = vmatpush1.bf16.msra.mxu0 0
          %1700 = vmatprep.subr.bf16.mxu0 0
          %1701 = vmatpush1.bf16.msra.mxu0 0
          %1702 = vmatprep.subr.bf16.mxu0 0
          %1703 = vmatpush1.bf16.msra.mxu0 0
          %1704 = vmatprep.subr.bf16.mxu0 0
          %1705 = vmatpush1.bf16.msra.mxu0 0
          %1706 = vmatprep.subr.bf16.mxu0 0
          %1707 = vmatpush1.bf16.msra.mxu0 0
          %1708 = vmatprep.subr.bf16.mxu0 0
          %1709 = vmatpush1.bf16.msra.mxu0 0
          %1710 = vmatprep.mubr.bf16.mxu0 0
          %1711 = vmatmul.mubr.bf16.gmra.mrb[0].mxu0 %v1673
          %v1712 = vpop.f32.mrb[0].mxu0
          %v1713 = vadd.f32 0.0, %v1712
          %v1714 = vpop.f32.mrb[0].mxu0
          %v1715 = vpop.f32.mrb[0].mxu0
          %v1716 = vpop.f32.mrb[0].mxu0
          %1717 = vdwg.mxu0
          %v1719 = vsel %vm1016, %v1658, 0
          %1721 = vmatprep.subr.bf16.mxu0 0
          %1722 = vmatpush1.bf16.msra.mxu0 %v1719
          %1723 = vmatprep.subr.bf16.mxu0 0
          %1724 = vmatpush1.bf16.msra.mxu0 0
          %1725 = vmatprep.subr.bf16.mxu0 0
          %1726 = vmatpush1.bf16.msra.mxu0 0
          %1727 = vmatprep.subr.bf16.mxu0 0
          %1728 = vmatpush1.bf16.msra.mxu0 0
          %1729 = vmatprep.subr.bf16.mxu0 0
          %1730 = vmatpush1.bf16.msra.mxu0 0
          %1731 = vmatprep.subr.bf16.mxu0 0
          %1732 = vmatpush1.bf16.msra.mxu0 0
          %1733 = vmatprep.subr.bf16.mxu0 0
          %1734 = vmatpush1.bf16.msra.mxu0 0
          %1735 = vmatprep.subr.bf16.mxu0 0
          %1736 = vmatpush1.bf16.msra.mxu0 0
          %1737 = vmatprep.subr.bf16.mxu0 0
          %1738 = vmatpush1.bf16.msra.mxu0 0
          %1739 = vmatprep.subr.bf16.mxu0 0
          %1740 = vmatpush1.bf16.msra.mxu0 0
          %1741 = vmatprep.subr.bf16.mxu0 0
          %1742 = vmatpush1.bf16.msra.mxu0 0
          %1743 = vmatprep.subr.bf16.mxu0 0
          %1744 = vmatpush1.bf16.msra.mxu0 0
          %1745 = vmatprep.subr.bf16.mxu0 0
          %1746 = vmatpush1.bf16.msra.mxu0 0
          %1747 = vmatprep.subr.bf16.mxu0 0
          %1748 = vmatpush1.bf16.msra.mxu0 0
          %1749 = vmatprep.subr.bf16.mxu0 0
          %1750 = vmatpush1.bf16.msra.mxu0 0
          %1751 = vmatprep.subr.bf16.mxu0 0
          %1752 = vmatpush1.bf16.msra.mxu0 0
          %1753 = vmatprep.mubr.bf16.mxu0 0
          %1754 = vmatmul.mubr.bf16.gmra.mrb[0].mxu0 %v1014
          %v1755 = vpop.f32.mrb[0].mxu0
          %v1756 = vadd.f32 %v1713, %v1755
          %v1757 = vpop.f32.mrb[0].mxu0
          %v1758 = vpop.f32.mrb[0].mxu0
          %v1759 = vpop.f32.mrb[0].mxu0
          %1760 = vdwg.mxu0
          %v1762 = vlaneseq
          %v1763 = vshrl.u32 %v1762, 7
          %v1764 = vsub.s32 0, %v1763
          %v1765 = vrot.slane %v1660, %v1764
          %v1767 = vadd.f32 %v1756, %v1765
          %v1768 = vmax.f32 %v1767, 0.0
          %v1769 = vpack.c.bf16 %v1768, %v1768
          %v1771 = vlaneseq
          %v1772 = vshrl.u32 %v1771, 7
          %v1773 = vsub.s32 0, %v1772
          %v1774 = vrot.slane %v1665, %v1773
          %v1780 = vunpack.c.l.b16 %v1661
          %v1781 = vunpack.c.l.b16 %v1662
          %v1782 = vunpack.c.l.b16 %v1663
          %v1783 = vunpack.c.l.b16 %v1664
          %v1784 = vpack.c.b16 %v1781, %v1780
          %v1785 = vpack.c.b16 %v1783, %v1782
          %v1789 = vsel %vm1128, %v1769, 0
          %1791 = vmatprep.subr.bf16.mxu0 0
          %1792 = vmatpush1.bf16.msra.mxu0 %v1784
          %1793 = vmatprep.subr.bf16.mxu0 0
          %1794 = vmatpush1.bf16.msra.mxu0 %v1785
          %1795 = vmatprep.subr.bf16.mxu0 0
          %1796 = vmatpush1.bf16.msra.mxu0 0
          %1797 = vmatprep.subr.bf16.mxu0 0
          %1798 = vmatpush1.bf16.msra.mxu0 0
          %1799 = vmatprep.subr.bf16.mxu0 0
          %1800 = vmatpush1.bf16.msra.mxu0 0
          %1801 = vmatprep.subr.bf16.mxu0 0
          %1802 = vmatpush1.bf16.msra.mxu0 0
          %1803 = vmatprep.subr.bf16.mxu0 0
          %1804 = vmatpush1.bf16.msra.mxu0 0
          %1805 = vmatprep.subr.bf16.mxu0 0
          %1806 = vmatpush1.bf16.msra.mxu0 0
          %1807 = vmatprep.subr.bf16.mxu0 0
          %1808 = vmatpush1.bf16.msra.mxu0 0
          %1809 = vmatprep.subr.bf16.mxu0 0
          %1810 = vmatpush1.bf16.msra.mxu0 0
          %1811 = vmatprep.subr.bf16.mxu0 0
          %1812 = vmatpush1.bf16.msra.mxu0 0
          %1813 = vmatprep.subr.bf16.mxu0 0
          %1814 = vmatpush1.bf16.msra.mxu0 0
          %1815 = vmatprep.subr.bf16.mxu0 0
          %1816 = vmatpush1.bf16.msra.mxu0 0
          %1817 = vmatprep.subr.bf16.mxu0 0
          %1818 = vmatpush1.bf16.msra.mxu0 0
          %1819 = vmatprep.subr.bf16.mxu0 0
          %1820 = vmatpush1.bf16.msra.mxu0 0
          %1821 = vmatprep.subr.bf16.mxu0 0
          %1822 = vmatpush1.bf16.msra.mxu0 0
          %1823 = vmatprep.mubr.bf16.mxu0 0
          %1824 = vmatmul.mubr.bf16.gmra.mrb[0].mxu0 %v1789
          %v1825 = vpop.f32.mrb[0].mxu0
          %v1826 = vadd.f32 %v1774, %v1825
          %v1827 = vpop.f32.mrb[0].mxu0
          %v1828 = vpop.f32.mrb[0].mxu0
          %v1829 = vpop.f32.mrb[0].mxu0
          %1830 = vdwg.mxu0
          %v1831 = vmax.f32 %v1826, 0.0
          %v1832 = vpack.c.bf16 %v1831, %v1831
          %v1834 = vlaneseq
          %v1835 = vshrl.u32 %v1834, 7
          %v1836 = vsub.s32 0, %v1835
          %v1837 = vrot.slane %v1670, %v1836
          %v1843 = vunpack.c.l.b16 %v1666
          %v1844 = vunpack.c.l.b16 %v1667
          %v1845 = vunpack.c.l.b16 %v1668
          %v1846 = vunpack.c.l.b16 %v1669
          %v1847 = vpack.c.b16 %v1844, %v1843
          %v1848 = vpack.c.b16 %v1846, %v1845
          %v1852 = vsel %vm1128, %v1832, 0
          %1854 = vmatprep.subr.bf16.mxu0 0
          %1855 = vmatpush1.bf16.msra.mxu0 %v1847
          %1856 = vmatprep.subr.bf16.mxu0 0
          %1857 = vmatpush1.bf16.msra.mxu0 %v1848
          %1858 = vmatprep.subr.bf16.mxu0 0
          %1859 = vmatpush1.bf16.msra.mxu0 0
          %1860 = vmatprep.subr.bf16.mxu0 0
          %1861 = vmatpush1.bf16.msra.mxu0 0
          %1862 = vmatprep.subr.bf16.mxu0 0
          %1863 = vmatpush1.bf16.msra.mxu0 0
          %1864 = vmatprep.subr.bf16.mxu0 0
          %1865 = vmatpush1.bf16.msra.mxu0 0
          %1866 = vmatprep.subr.bf16.mxu0 0
          %1867 = vmatpush1.bf16.msra.mxu0 0
          %1868 = vmatprep.subr.bf16.mxu0 0
          %1869 = vmatpush1.bf16.msra.mxu0 0
          %1870 = vmatprep.subr.bf16.mxu0 0
          %1871 = vmatpush1.bf16.msra.mxu0 0
          %1872 = vmatprep.subr.bf16.mxu0 0
          %1873 = vmatpush1.bf16.msra.mxu0 0
          %1874 = vmatprep.subr.bf16.mxu0 0
          %1875 = vmatpush1.bf16.msra.mxu0 0
          %1876 = vmatprep.subr.bf16.mxu0 0
          %1877 = vmatpush1.bf16.msra.mxu0 0
          %1878 = vmatprep.subr.bf16.mxu0 0
          %1879 = vmatpush1.bf16.msra.mxu0 0
          %1880 = vmatprep.subr.bf16.mxu0 0
          %1881 = vmatpush1.bf16.msra.mxu0 0
          %1882 = vmatprep.subr.bf16.mxu0 0
          %1883 = vmatpush1.bf16.msra.mxu0 0
          %1884 = vmatprep.subr.bf16.mxu0 0
          %1885 = vmatpush1.bf16.msra.mxu0 0
          %1886 = vmatprep.mubr.bf16.mxu0 0
          %1887 = vmatmul.mubr.bf16.gmra.mrb[0].mxu0 %v1852
          %v1888 = vpop.f32.mrb[0].mxu0
          %v1889 = vadd.f32 %v1837, %v1888
          %v1890 = vpop.f32.mrb[0].mxu0
          %v1891 = vpop.f32.mrb[0].mxu0
          %v1892 = vpop.f32.mrb[0].mxu0
          %1893 = vdwg.mxu0
          %v1894 = vmul.f32 %v1889, 0.1
          %v1895 = vadd.f32 %v898, %v1894
          %1896 = vst.msk [vmem:[#allocation2] sm:$0xff] %vm883, %v1895
          %s1897 = smul.u32 %s897, 8
          %s1898 = scalar_lea.vmem %s880, %s1897
          %1899 = vst.msk [vmem:[%s1898] sm:$0xff] %vm883, %v1895
        $region149: #{tpu_custom_call.1} parent=131 // loop_footer
          %s896 = sadd.s32 1, %s892
        $region150: #{tpu_custom_call.1} parent=131 // loop_footer_branch
          %891 = sbr.rel target = $region146
        $region151: #{tpu_custom_call.1} parent=131 // loop_exit
          _
        %p1900 = scmp.lt.s32.totalorder %s41, 1
        %s1901 = scalar_select %p1900, %s41, 1
        %s1902 = smul.addr %s1901, 4
        %s1903 = smul.addr %s1902, 8
        %s1904 = scalar_lea.vmem %s28, %s1903
        // Predicated region
        $region152: #{tpu_custom_call.1} parent=131 // pred_check
          %p1905 = pneg %p652
        $region153: #{tpu_custom_call.1} parent=131 // pred_check_branch
          %1907 = sbr.rel (%p1905) target = $region155
        $region154: #{tpu_custom_call.1} parent=131 // pred_region
          _
        $region155: #{tpu_custom_call.1} parent=131 // pred_fallthru
          _
      $region132: #{tpu_custom_call.1} parent=5 // pred_fallthru
        _
      %p1908 = scmp.le.s32.totalorder 2, %s36
      // Predicated region
      $region156: #{tpu_custom_call.1} parent=5 // pred_check
        %p1909 = pneg %p1908
      $region157: #{tpu_custom_call.1} parent=5 // pred_check_branch
        %1911 = sbr.rel (%p1909) target = $region159
      $region158: #{tpu_custom_call.1} parent=5 // pred_region
        %s1912 = ssub.s32 %s36, 2
        // Predicated region
        $region160: #{tpu_custom_call.1} parent=158 // pred_check
          %p1913 = pneg %p658
        $region161: #{tpu_custom_call.1} parent=158 // pred_check_branch
          %1915 = sbr.rel (%p1913) target = $region163
        $region162: #{tpu_custom_call.1} parent=158 // pred_region
          %p1916 = scmp.lt.s32.totalorder %s42, 1
          %s1917 = scalar_select %p1916, %s42, 1
          %s1918 = smul.addr %s1917, 4
          %s1919 = smul.addr %s1918, 8
          %s1920 = scalar_lea.vmem %s28, %s1919
        $region163: #{tpu_custom_call.1} parent=158 // pred_fallthru
          _
      $region159: #{tpu_custom_call.1} parent=5 // pred_fallthru
        _
    $region6: #{tpu_custom_call.1} parent=1 // loop_footer
      %s40 = sadd.s32 1, %s36
    $region7: #{tpu_custom_call.1} parent=1 // loop_footer_branch
      %35 = sbr.rel target = $region3
    $region8: #{tpu_custom_call.1} parent=1 // loop_exit
      _
    %1921 = vsyncpa [#allocation4], 1
    %s1922 = scalar_lea.sflag [#allocation4], 1
    %1923 = vsyncpa %s1922, 1
    %1924 = vsyncpa [#allocation6], 1

</llo_original>
